<compile_context>
chip_gen: v7x
topology: tpu7x:2x2x1
jax: 0.10.0
libtpu: 0.0.40
codegen_flags: <defaults>
</compile_context>

<pallas_src>
import jax
import jax.numpy as jnp
import numpy as np
from jax.experimental import pallas as pl
from jax.experimental.pallas import tpu as pltpu


def _round_up(x, m):
    return ((x + m - 1) // m) * m


def _simmim_kernel(x_ref, mask_ref, img_ref, w1_ref, b1_ref, w2_ref, b2_ref,
                   mrow_ref, out_ref):
    """One grid step processes TM token rows (batch fused into rows)."""
    tm = x_ref.shape[0]
    cp = img_ref.shape[1]

    # decoder_embed: 1x1 conv == per-token matmul (bf16 MXU, f32 accumulate).
    y1 = jnp.dot(x_ref[...], w1_ref[...],
                 preferred_element_type=jnp.float32) + b1_ref[...]

    # final layer: 1x1 conv embed_dim -> encoder_stride**2 * 3 (lane-padded).
    y2 = jnp.dot(y1.astype(jnp.bfloat16), w2_ref[...],
                 preferred_element_type=jnp.float32) + b2_ref[...]

    # random_masking: every masked token maps to the same constant row
    # (mask_token @ w2 + b2), precomputed in the wrapper -> blend post-matmul.
    y2 = jnp.where(mask_ref[...] > 0.5, mrow_ref[...], y2)

    # forward_loss: squared error vs the inverse-pixel-shuffled target
    # (PixelShuffle is a pure channel->spatial permutation, so token space is
    # equivalent).
    d = y2 - img_ref[...]
    sq = d * d                                               # (tm, cp) f32

    # Fold into an (8, cp) lane-dense partial-sum slab with pure VPU vreg adds
    # (sum over sublane groups); cross-lane reduction happens once in JAX.
    out_ref[0] = jnp.sum(sq.reshape(tm // 8, 8, cp), axis=0)  # (8, cp)


def simmim_decoder_loss(x_nchw, images, params, mask, encoder_stride, *, tm=512):
    """Scalar loss of SimMIMDecoder.forward (gt_bboxes=None path)."""
    B, C, h, w = x_nchw.shape
    L = h * w
    es = encoder_stride
    c_out = es * es * 3
    cp = _round_up(c_out, 128)          # lane-pad output channels
    R = B * L                           # batch fused into the row dimension
    assert images.shape == (B, 3, h * es, w * es)

    # --- JAX glue: relayouts into token space -------------------------------
    # TODO(synk): fuse these relayouts (NCHW->tokens and the inverse
    #   PixelShuffle of `images`) into the kernel's input DMA by consuming an
    #   NCHW image slab per row tile and permuting in VMEM; currently they cost
    #   one extra HBM read+write pass over `images`.
    x_rows = jnp.transpose(x_nchw, (0, 2, 3, 1)).reshape(R, C).astype(jnp.bfloat16)
    img_rows = images.reshape(B, 3, h, es, w, es)
    img_rows = jnp.transpose(img_rows, (0, 2, 4, 1, 3, 5)).reshape(R, c_out)
    img_rows = jnp.pad(img_rows, ((0, 0), (0, cp - c_out))).astype(jnp.float32)
    mask_rows = mask.astype(jnp.float32).reshape(R, 1)

    # --- parameters (bf16 weights for the MXU, f32 biases) ------------------
    w1 = params["w1"].astype(jnp.bfloat16)                              # [C, C]
    b1 = params["b1"].reshape(1, C).astype(jnp.float32)
    w2 = jnp.pad(params["w2"], ((0, 0), (0, cp - c_out))).astype(jnp.bfloat16)
    b2 = jnp.pad(params["b2"], (0, cp - c_out)).reshape(1, cp).astype(jnp.float32)
    tok = params["mask_token"].reshape(1, C).astype(jnp.bfloat16)
    # constant output row for masked tokens: mask_token @ w2 + b2
    mrow = jnp.dot(tok, w2, preferred_element_type=jnp.float32) + b2    # [1, cp]

    # --- pad rows to a multiple of the tile size (16-row granule for bf16) --
    tm_eff = min(tm, _round_up(R, 16))
    r_pad = _round_up(R, tm_eff)
    if r_pad != R:
        extra = r_pad - R
        x_rows = jnp.pad(x_rows, ((0, extra), (0, 0)))
        # padded rows: masked, with target == masked-row constant -> zero error
        mask_rows = jnp.pad(mask_rows, ((0, extra), (0, 0)), constant_values=1.0)
        img_rows = jnp.concatenate(
            [img_rows, jnp.broadcast_to(mrow, (extra, cp))], axis=0)
    num_tiles = r_pad // tm_eff

    partials = pl.pallas_call(
        _simmim_kernel,
        out_shape=jax.ShapeDtypeStruct((num_tiles, 8, cp), jnp.float32),
        grid_spec=pltpu.PrefetchScalarGridSpec(
            num_scalar_prefetch=0,
            grid=(num_tiles,),
            in_specs=[
                pl.BlockSpec((tm_eff, C), lambda i: (i, 0)),     # x tokens (bf16)
                pl.BlockSpec((tm_eff, 1), lambda i: (i, 0)),     # mask
                pl.BlockSpec((tm_eff, cp), lambda i: (i, 0)),    # image tokens
                pl.BlockSpec((C, C), lambda i: (0, 0)),          # w1
                pl.BlockSpec((1, C), lambda i: (0, 0)),          # b1
                pl.BlockSpec((C, cp), lambda i: (0, 0)),         # w2 (lane-padded)
                pl.BlockSpec((1, cp), lambda i: (0, 0)),         # b2 (lane-padded)
                pl.BlockSpec((1, cp), lambda i: (0, 0)),         # masked-row const
            ],
            out_specs=pl.BlockSpec((1, 8, cp), lambda i: (i, 0, 0)),
        ),
        compiler_params=pltpu.CompilerParams(
            dimension_semantics=("parallel",),   # tiles independent -> 2 TCs on v7x
            vmem_limit_bytes=32 * 1024 * 1024,
        ),
    )(x_rows, mask_rows, img_rows, w1, b1, w2, b2, mrow)

    # TODO(synk): self.norm_pix_loss is never set in the PyTorch __init__;
    # treated as False here (plain MSE over every pixel).
    n_elems = B * 3 * (h * es) * (w * es)
    return jnp.sum(partials) / n_elems


def _reference_loss_bf16(x_nchw, images, params, mask, encoder_stride):
    """Pure-JAX reference that mirrors the kernel's bf16-matmul / f32-acc path."""
    B, C, h, w = x_nchw.shape
    es = encoder_stride
    c_out = es * es * 3
    x_tok = jnp.transpose(x_nchw, (0, 2, 3, 1)).reshape(B, h * w, C).astype(jnp.bfloat16)
    w1 = params["w1"].astype(jnp.bfloat16)
    w2 = params["w2"].astype(jnp.bfloat16)
    tok = params["mask_token"].reshape(1, C).astype(jnp.bfloat16)
    y1 = jnp.dot(x_tok, w1, preferred_element_type=jnp.float32) + params["b1"][None, None, :]
    y2 = jnp.dot(y1.astype(jnp.bfloat16), w2,
                 preferred_element_type=jnp.float32) + params["b2"][None, None, :]
    mrow = jnp.dot(tok, w2, preferred_element_type=jnp.float32) + params["b2"][None, :]
    y2 = jnp.where(mask[..., None] > 0.5, mrow[None], y2)
    img_tok = images.reshape(B, 3, h, es, w, es)
    img_tok = jnp.transpose(img_tok, (0, 2, 4, 1, 3, 5)).reshape(B, h * w, c_out)
    return jnp.mean((y2 - img_tok) ** 2)


def _reference_loss_f32(x_nchw, images, params, mask, encoder_stride):
    """Pure-f32 reference matching the PyTorch module's math exactly."""
    B, C, h, w = x_nchw.shape
    es = encoder_stride
    c_out = es * es * 3
    x_tok = jnp.transpose(x_nchw, (0, 2, 3, 1)).reshape(B, h * w, C)
    y1 = x_tok @ params["w1"] + params["b1"][None, None, :]
    y1 = jnp.where(mask[..., None] > 0.5, params["mask_token"][None, None, :], y1)
    y2 = y1 @ params["w2"] + params["b2"][None, None, :]
    img_tok = images.reshape(B, 3, h, es, w, es)
    img_tok = jnp.transpose(img_tok, (0, 2, 4, 1, 3, 5)).reshape(B, h * w, c_out)
    return jnp.mean((y2 - img_tok) ** 2)


if __name__ == "__main__":
    key = jax.random.PRNGKey(0)

    # small but layout-friendly shapes
    B = 2
    embed_dim = 128          # lane-aligned channel dim
    encoder_stride = 4       # -> output channels = 4*4*3 = 48 (lane-padded to 128)
    h = w = 16               # feature map -> L = 256 tokens, B*L = 512 rows
    mask_ratio = 0.75
    L = h * w
    c_out = encoder_stride * encoder_stride * 3

    k_x, k_img, k_w1, k_b1, k_w2, k_b2, k_tok, k_noise = jax.random.split(key, 8)

    # deterministic synthetic parameters (shapes match the PyTorch module)
    params = {
        # decoder_embed: Conv2d(embed_dim, embed_dim, 1) stored as [C_in, C_out]
        "w1": jax.random.normal(k_w1, (embed_dim, embed_dim), jnp.float32) * 0.02,
        "b1": jax.random.normal(k_b1, (embed_dim,), jnp.float32) * 0.02,
        # final layer: Conv2d(embed_dim, encoder_stride**2 * 3, 1)
        "w2": jax.random.normal(k_w2, (embed_dim, c_out), jnp.float32) * 0.02,
        "b2": jax.random.normal(k_b2, (c_out,), jnp.float32) * 0.02,
        # mask_token: Parameter(1, 1, embed_dim), init normal(std=0.02)
        "mask_token": jax.random.normal(k_tok, (embed_dim,), jnp.float32) * 0.02,
    }

    # inputs
    x = jax.random.normal(k_x, (B, embed_dim, h, w), jnp.float32)
    images = jax.random.normal(
        k_img, (B, 3, h * encoder_stride, w * encoder_stride), jnp.float32)

    # random_masking indices (argsort of uniform noise) as JAX glue; the kernel
    # consumes the equivalent boolean mask (identical to the gather/restore
    # sequence in the PyTorch module).
    len_keep = int(L * (1 - mask_ratio))
    noise = jax.random.uniform(k_noise, (B, L))
    ids_shuffle = jnp.argsort(noise, axis=1)
    ids_restore = jnp.argsort(ids_shuffle, axis=1)
    mask = (ids_restore >= len_keep).astype(jnp.float32)      # 1.0 == masked

    # tm=256 on the small demo problem so the grid has >1 tile; default tm=512
    # is the production setting (amortizes per-step overhead on big inputs).
    loss = jax.block_until_ready(
        simmim_decoder_loss(x, images, params, mask, encoder_stride, tm=256))

    ref_bf16 = jax.block_until_ready(
        _reference_loss_bf16(x, images, params, mask, encoder_stride))
    ref_f32 = jax.block_until_ready(
        _reference_loss_f32(x, images, params, mask, encoder_stride))

    # tight check against the precision-matched reference, loose check against
    # the pure-f32 module semantics (bf16 MXU rounding only).
    np.testing.assert_allclose(np.asarray(loss), np.asarray(ref_bf16),
                               rtol=5e-4, atol=1e-6)
    np.testing.assert_allclose(np.asarray(loss), np.asarray(ref_f32),
                               rtol=5e-2, atol=1e-4)

    print("KERNEL_OK")
</pallas_src>

<mosaic_0001>
module attributes {stable_mosaic.version = 11 : i64} {
  func.func @_simmim_kernel(%arg0: i32, %arg1: memref<256x128xbf16, #tpu.memory_space<vmem>>, %arg2: memref<256x1xf32, #tpu.memory_space<vmem>>, %arg3: memref<256x128xf32, #tpu.memory_space<vmem>>, %arg4: memref<128x128xbf16, #tpu.memory_space<vmem>>, %arg5: memref<1x128xf32, #tpu.memory_space<vmem>>, %arg6: memref<128x128xbf16, #tpu.memory_space<vmem>>, %arg7: memref<1x128xf32, #tpu.memory_space<vmem>>, %arg8: memref<1x128xf32, #tpu.memory_space<vmem>>, %arg9: memref<1x8x128xf32, #tpu.memory_space<vmem>>) attributes {dimension_semantics = [#tpu.dimension_semantics<parallel>], iteration_bounds = array<i64: 2>, scalar_prefetch = 0 : i64, scratch_operands = 0 : i64, tpu.core_type = #tpu.core_type<tc>, window_params = [{transform_indices = @transform_0, window_bounds = array<i64: 256, 128>}, {transform_indices = @transform_1, window_bounds = array<i64: 256, 1>}, {transform_indices = @transform_2, window_bounds = array<i64: 256, 128>}, {pipeline_mode = #tpu.pipeline_mode<synchronous>, transform_indices = @transform_3, window_bounds = array<i64: 128, 128>}, {pipeline_mode = #tpu.pipeline_mode<synchronous>, transform_indices = @transform_4, window_bounds = array<i64: 1, 128>}, {pipeline_mode = #tpu.pipeline_mode<synchronous>, transform_indices = @transform_5, window_bounds = array<i64: 128, 128>}, {pipeline_mode = #tpu.pipeline_mode<synchronous>, transform_indices = @transform_6, window_bounds = array<i64: 1, 128>}, {pipeline_mode = #tpu.pipeline_mode<synchronous>, transform_indices = @transform_7, window_bounds = array<i64: 1, 128>}, {transform_indices = @transform_8, window_bounds = array<i64: 1, 8, 128>}]} {
    %c0 = arith.constant 0 : index
    %c0_0 = arith.constant 0 : index
    %0 = vector.load %arg1[%c0, %c0_0] : memref<256x128xbf16, #tpu.memory_space<vmem>>, vector<256x128xbf16>
    %c0_1 = arith.constant 0 : index
    %c0_2 = arith.constant 0 : index
    %1 = vector.load %arg4[%c0_1, %c0_2] : memref<128x128xbf16, #tpu.memory_space<vmem>>, vector<128x128xbf16>
    %cst = arith.constant dense<0.000000e+00> : vector<256x128xf32>
    %2 = tpu.matmul %0, %1, %cst {dimension_numbers = #tpu.dot_dimension_numbers<[1], [0], [0], [1], [0, 0, 1, 1], [], []>} : vector<256x128xbf16>, vector<128x128xbf16>, vector<256x128xf32> -> vector<256x128xf32>
    %c0_3 = arith.constant 0 : index
    %c0_4 = arith.constant 0 : index
    %3 = vector.load %arg5[%c0_3, %c0_4] : memref<1x128xf32, #tpu.memory_space<vmem>>, vector<1x128xf32>
    %4 = vector.broadcast %3 : vector<1x128xf32> to vector<256x128xf32>
    %5 = arith.addf %2, %4 : vector<256x128xf32>
    %6 = arith.truncf %5 : vector<256x128xf32> to vector<256x128xbf16>
    %c0_5 = arith.constant 0 : index
    %c0_6 = arith.constant 0 : index
    %7 = vector.load %arg6[%c0_5, %c0_6] : memref<128x128xbf16, #tpu.memory_space<vmem>>, vector<128x128xbf16>
    %cst_7 = arith.constant dense<0.000000e+00> : vector<256x128xf32>
    %8 = tpu.matmul %6, %7, %cst_7 {dimension_numbers = #tpu.dot_dimension_numbers<[1], [0], [0], [1], [0, 0, 1, 1], [], []>} : vector<256x128xbf16>, vector<128x128xbf16>, vector<256x128xf32> -> vector<256x128xf32>
    %c0_8 = arith.constant 0 : index
    %c0_9 = arith.constant 0 : index
    %9 = vector.load %arg7[%c0_8, %c0_9] : memref<1x128xf32, #tpu.memory_space<vmem>>, vector<1x128xf32>
    %10 = vector.broadcast %9 : vector<1x128xf32> to vector<256x128xf32>
    %11 = arith.addf %8, %10 : vector<256x128xf32>
    %c0_10 = arith.constant 0 : index
    %c0_11 = arith.constant 0 : index
    %12 = vector.load %arg2[%c0_10, %c0_11] : memref<256x1xf32, #tpu.memory_space<vmem>>, vector<256x1xf32>
    %cst_12 = arith.constant 5.000000e-01 : f32
    %13 = vector.broadcast %cst_12 : f32 to vector<256x1xf32>
    %14 = arith.cmpf ogt, %12, %13 : vector<256x1xf32>
    %c0_13 = arith.constant 0 : index
    %c0_14 = arith.constant 0 : index
    %15 = vector.load %arg8[%c0_13, %c0_14] : memref<1x128xf32, #tpu.memory_space<vmem>>, vector<1x128xf32>
    %16 = vector.shape_cast %14 : vector<256x1xi1> to vector<256x1xi1>
    %17 = vector.broadcast %16 : vector<256x1xi1> to vector<256x128xi1>
    %18 = vector.shape_cast %15 : vector<1x128xf32> to vector<1x128xf32>
    %19 = vector.broadcast %18 : vector<1x128xf32> to vector<256x128xf32>
    %20 = arith.select %17, %19, %11 : vector<256x128xi1>, vector<256x128xf32>
    %c0_15 = arith.constant 0 : index
    %c0_16 = arith.constant 0 : index
    %21 = vector.load %arg3[%c0_15, %c0_16] : memref<256x128xf32, #tpu.memory_space<vmem>>, vector<256x128xf32>
    %22 = arith.subf %20, %21 : vector<256x128xf32>
    %23 = arith.mulf %22, %22 : vector<256x128xf32>
    %24 = vector.shape_cast %23 : vector<256x128xf32> to vector<32x8x128xf32>
    %cst_17 = arith.constant dense<0.000000e+00> : vector<8x128xf32>
    %25 = vector.multi_reduction <add>, %24, %cst_17 [0] : vector<32x8x128xf32> to vector<8x128xf32>
    %c0_18 = arith.constant 0 : index
    %c0_19 = arith.constant 0 : index
    %c0_20 = arith.constant 0 : index
    %26 = vector.load %arg9[%c0_18, %c0_19, %c0_20] : memref<1x8x128xf32, #tpu.memory_space<vmem>>, vector<1x8x128xf32>
    %27 = vector.shape_cast %26 : vector<1x8x128xf32> to vector<8x128xf32>
    %28 = vector.shape_cast %25 : vector<8x128xf32> to vector<1x8x128xf32>
    tpu.vector_store %arg9[%c0_18, %c0_19, %c0_20], %28 {strides = array<i32>} : memref<1x8x128xf32, #tpu.memory_space<vmem>>, vector<1x8x128xf32>,
    return
  }
  func.func @transform_0(%arg0: i32) -> (i32, i32) {
    %c0_i32 = arith.constant 0 : i32
    %c0_i32_0 = arith.constant 0 : i32
    return %arg0, %c0_i32 : i32, i32
  }
  func.func @transform_1(%arg0: i32) -> (i32, i32) {
    %c0_i32 = arith.constant 0 : i32
    %c0_i32_0 = arith.constant 0 : i32
    return %arg0, %c0_i32 : i32, i32
  }
  func.func @transform_2(%arg0: i32) -> (i32, i32) {
    %c0_i32 = arith.constant 0 : i32
    %c0_i32_0 = arith.constant 0 : i32
    return %arg0, %c0_i32 : i32, i32
  }
  func.func @transform_3(%arg0: i32) -> (i32, i32) {
    %c0_i32 = arith.constant 0 : i32
    %c0_i32_0 = arith.constant 0 : i32
    %c0_i32_1 = arith.constant 0 : i32
    return %c0_i32, %c0_i32_0 : i32, i32
  }
  func.func @transform_4(%arg0: i32) -> (i32, i32) {
    %c0_i32 = arith.constant 0 : i32
    %c0_i32_0 = arith.constant 0 : i32
    %c0_i32_1 = arith.constant 0 : i32
    return %c0_i32, %c0_i32_0 : i32, i32
  }
  func.func @transform_5(%arg0: i32) -> (i32, i32) {
    %c0_i32 = arith.constant 0 : i32
    %c0_i32_0 = arith.constant 0 : i32
    %c0_i32_1 = arith.constant 0 : i32
    return %c0_i32, %c0_i32_0 : i32, i32
  }
  func.func @transform_6(%arg0: i32) -> (i32, i32) {
    %c0_i32 = arith.constant 0 : i32
    %c0_i32_0 = arith.constant 0 : i32
    %c0_i32_1 = arith.constant 0 : i32
    return %c0_i32, %c0_i32_0 : i32, i32
  }
  func.func @transform_7(%arg0: i32) -> (i32, i32) {
    %c0_i32 = arith.constant 0 : i32
    %c0_i32_0 = arith.constant 0 : i32
    %c0_i32_1 = arith.constant 0 : i32
    return %c0_i32, %c0_i32_0 : i32, i32
  }
  func.func @transform_8(%arg0: i32) -> (i32, i32, i32) {
    %c0_i32 = arith.constant 0 : i32
    %c0_i32_0 = arith.constant 0 : i32
    %c0_i32_1 = arith.constant 0 : i32
    return %arg0, %c0_i32, %c0_i32_0 : i32, i32, i32
  }
}

</mosaic_0001>

<llo_original>
// kernel: tpu_custom_call.1
$region0: #{tpu_custom_call.1}
  #allocation0 [shape = 'u32[]', space=smem, size = 0x4, offset = 0x4, fixed_abs, tag = 'smem constant byte address 0x4 - core index']
  #allocation1 [shape = 'u32[144,128]{1,0:T(1,128)}', space=vmem, size = 0x12000, scoped, tag = 'internal scratch']
  %s0 = inlined_call_operand.hbm [shape: bf16[512,128], index: 0, kind: input, shape index: {}]
  %s1 = inlined_call_operand.vmem [shape: f32[512,1], index: 1, kind: input, shape index: {}]
  %s2 = inlined_call_operand.vmem [shape: f32[512,128], index: 2, kind: input, shape index: {}]
  %s3 = inlined_call_operand.hbm [shape: bf16[128,128], index: 3, kind: input, shape index: {}]
  %s4 = inlined_call_operand.vmem [shape: f32[1,128], index: 4, kind: input, shape index: {}]
  %s5 = inlined_call_operand.hbm [shape: bf16[128,128], index: 5, kind: input, shape index: {}]
  %s6 = inlined_call_operand.vmem [shape: f32[1,128], index: 6, kind: input, shape index: {}]
  %s7 = inlined_call_operand.vmem [shape: f32[1,128], index: 7, kind: input, shape index: {}]
  %s8 = inlined_call_operand.hbm [shape: f32[2,8,128], index: 8, kind: output, shape index: {}]
  %s9 = sld [smem:[#allocation0]]
  $region77: #{tpu_custom_call.1} parent=0
    _
  %s11 = ssub.s32 1, %s9
  %s12 = scalar_select 0, %s11, %s9
  $region1: #{tpu_custom_call.1} parent=0
    #allocation2 [shape = 'u8[131072]{0}', space=vmem, size = 0x20000, scoped, tag = 'input window, operand 0']
    #allocation3 [shape = 's32[2]{0}', space=sflag, size = 0x8, scoped, tag = 'scoped memory for tpu_custom_call.1']
    #allocation4 [shape = 's32[2]{0}', space=sflag, size = 0x8, scoped, tag = 'scoped memory for tpu_custom_call.1']
    #allocation5 [shape = 'u8[32768]{0}', space=vmem, size = 0x8000, scoped, tag = 'input window, operand 3, single buffered']
    #allocation6 [shape = 's32[1]{0}', space=sflag, size = 0x4, scoped, tag = 'scoped memory for tpu_custom_call.1']
    #allocation7 [shape = 'u8[32768]{0}', space=vmem, size = 0x8000, scoped, tag = 'input window, operand 5, single buffered']
    #allocation8 [shape = 'u8[8192]{0}', space=vmem, size = 0x2000, scoped, tag = 'output window, operand 0']
    %13 = vsyncpa [#allocation3], 0
    %s14 = scalar_lea.sflag [#allocation3], 1
    %15 = vsyncpa %s14, 0
    %16 = vsyncpa [#allocation6], 0
    %17 = vsyncpa [#allocation4], 0
    %s18 = scalar_lea.sflag [#allocation4], 1
    %19 = vsyncpa %s18, 0
    loop: start=0, step=1, limit=4
    $region2: #{tpu_custom_call.1} parent=1 // loop_pre_header
      _
    $region3: #{tpu_custom_call.1} parent=1 // loop_header
      %s21 = sphi 0, %s25
      %p22 = scmp.ge.s32.totalorder %s21, 4
      %s31 = sphi 0, %s33
      %s34 = sphi 0, %s31
      %s35 = sphi 0, %s34
      %s51 = sphi 0, %s35
      %s57 = sphi 0, %s59
      %s60 = sphi 0, %s57
      %s61 = sphi 0, %s60
      %s77 = sphi 0, %s61
      %s83 = sphi 0, %s85
      %s86 = sphi 0, %s83
      %s87 = sphi 0, %s86
      %s103 = sphi 0, %s87
      %s107 = sphi 0, %s107
      %s109 = sphi 0, %s107
      %s110 = sphi 0, %s109
      %s124 = sphi 0, %s110
      %s128 = sphi 0, %s128
      %s130 = sphi 0, %s128
      %s131 = sphi 0, %s130
      %s145 = sphi 0, %s131
      %s149 = sphi 0, %s149
      %s151 = sphi 0, %s149
      %s152 = sphi 0, %s151
      %s166 = sphi 0, %s152
      %s170 = sphi 0, %s170
      %s172 = sphi 0, %s170
      %s173 = sphi 0, %s172
      %s187 = sphi 0, %s173
      %s191 = sphi 0, %s191
      %s193 = sphi 0, %s191
      %s194 = sphi 0, %s193
      %s208 = sphi 0, %s194
      %s214 = sphi 0, %s216
      %s217 = sphi 0, %s214
      %s218 = sphi 0, %s217
      %s234 = sphi 0, %s218
    $region4: #{tpu_custom_call.1} parent=1 // loop_header_branch
      %24 = sbr.rel (%p22) target = $region8
    $region5: #{tpu_custom_call.1} parent=1 // loop_body
      %s26 = ssub.s32 %s21, 1
      %s27 = ssub.s32 %s21, 2
      %s28 = sadd.s32 %s21, 1
      %s29 = ssub.s32 %s21, %s28
      %p30 = scmp.eq.s32.totalorder %s29, 0
      %s32 = sadd.s32 %s31, 1
      %s33 = scalar_select %p30, %s31, %s32
      %p36 = pneg %p30
      %p37 = scmp.eq.s32.totalorder %s21, 1
      %p38 = por %p36, %p37
      %p39 = scmp.ne.s32.totalorder %s31, %s34
      %p40 = scmp.eq.s32.totalorder %s21, 0
      %p41 = por %p39, %p40
      %p42 = scmp.ne.s32.totalorder %s31, %s34
      %p43 = scmp.eq.s32.totalorder %s26, 1
      %p44 = por %p42, %p43
      %p45 = scmp.ne.s32.totalorder %s34, %s35
      %p46 = scmp.eq.s32.totalorder %s26, 0
      %p47 = por %p45, %p46
      %p48 = scmp.ne.s32.totalorder %s34, %s35
      %p49 = scmp.eq.s32.totalorder %s27, 1
      %p50 = por %p48, %p49
      %p52 = scmp.ne.s32.totalorder %s35, %s51
      %p53 = scmp.eq.s32.totalorder %s27, 0
      %p54 = por %p52, %p53
      %s55 = ssub.s32 %s21, %s28
      %p56 = scmp.eq.s32.totalorder %s55, 0
      %s58 = sadd.s32 %s57, 1
      %s59 = scalar_select %p56, %s57, %s58
      %p62 = pneg %p56
      %p63 = scmp.eq.s32.totalorder %s21, 1
      %p64 = por %p62, %p63
      %p65 = scmp.ne.s32.totalorder %s57, %s60
      %p66 = scmp.eq.s32.totalorder %s21, 0
      %p67 = por %p65, %p66
      %p68 = scmp.ne.s32.totalorder %s57, %s60
      %p69 = scmp.eq.s32.totalorder %s26, 1
      %p70 = por %p68, %p69
      %p71 = scmp.ne.s32.totalorder %s60, %s61
      %p72 = scmp.eq.s32.totalorder %s26, 0
      %p73 = por %p71, %p72
      %p74 = scmp.ne.s32.totalorder %s60, %s61
      %p75 = scmp.eq.s32.totalorder %s27, 1
      %p76 = por %p74, %p75
      %p78 = scmp.ne.s32.totalorder %s61, %s77
      %p79 = scmp.eq.s32.totalorder %s27, 0
      %p80 = por %p78, %p79
      %s81 = ssub.s32 %s21, %s28
      %p82 = scmp.eq.s32.totalorder %s81, 0
      %s84 = sadd.s32 %s83, 1
      %s85 = scalar_select %p82, %s83, %s84
      %p88 = pneg %p82
      %p89 = scmp.eq.s32.totalorder %s21, 1
      %p90 = por %p88, %p89
      %p91 = scmp.ne.s32.totalorder %s83, %s86
      %p92 = scmp.eq.s32.totalorder %s21, 0
      %p93 = por %p91, %p92
      %p94 = scmp.ne.s32.totalorder %s83, %s86
      %p95 = scmp.eq.s32.totalorder %s26, 1
      %p96 = por %p94, %p95
      %p97 = scmp.ne.s32.totalorder %s86, %s87
      %p98 = scmp.eq.s32.totalorder %s26, 0
      %p99 = por %p97, %p98
      %p100 = scmp.ne.s32.totalorder %s86, %s87
      %p101 = scmp.eq.s32.totalorder %s27, 1
      %p102 = por %p100, %p101
      %p104 = scmp.ne.s32.totalorder %s87, %s103
      %p105 = scmp.eq.s32.totalorder %s27, 0
      %p106 = por %p104, %p105
      %s108 = sadd.s32 %s107, 1
      %p111 = scmp.eq.s32.totalorder %s21, 1
      %p112 = scmp.ne.s32.totalorder %s107, %s109
      %p113 = scmp.eq.s32.totalorder %s21, 0
      %p114 = por %p112, %p113
      %p115 = scmp.ne.s32.totalorder %s107, %s109
      %p116 = scmp.eq.s32.totalorder %s26, 1
      %p117 = por %p115, %p116
      %p118 = scmp.ne.s32.totalorder %s109, %s110
      %p119 = scmp.eq.s32.totalorder %s26, 0
      %p120 = por %p118, %p119
      %p121 = scmp.ne.s32.totalorder %s109, %s110
      %p122 = scmp.eq.s32.totalorder %s27, 1
      %p123 = por %p121, %p122
      %p125 = scmp.ne.s32.totalorder %s110, %s124
      %p126 = scmp.eq.s32.totalorder %s27, 0
      %p127 = por %p125, %p126
      %s129 = sadd.s32 %s128, 1
      %p132 = scmp.eq.s32.totalorder %s21, 1
      %p133 = scmp.ne.s32.totalorder %s128, %s130
      %p134 = scmp.eq.s32.totalorder %s21, 0
      %p135 = por %p133, %p134
      %p136 = scmp.ne.s32.totalorder %s128, %s130
      %p137 = scmp.eq.s32.totalorder %s26, 1
      %p138 = por %p136, %p137
      %p139 = scmp.ne.s32.totalorder %s130, %s131
      %p140 = scmp.eq.s32.totalorder %s26, 0
      %p141 = por %p139, %p140
      %p142 = scmp.ne.s32.totalorder %s130, %s131
      %p143 = scmp.eq.s32.totalorder %s27, 1
      %p144 = por %p142, %p143
      %p146 = scmp.ne.s32.totalorder %s131, %s145
      %p147 = scmp.eq.s32.totalorder %s27, 0
      %p148 = por %p146, %p147
      %s150 = sadd.s32 %s149, 1
      %p153 = scmp.eq.s32.totalorder %s21, 1
      %p154 = scmp.ne.s32.totalorder %s149, %s151
      %p155 = scmp.eq.s32.totalorder %s21, 0
      %p156 = por %p154, %p155
      %p157 = scmp.ne.s32.totalorder %s149, %s151
      %p158 = scmp.eq.s32.totalorder %s26, 1
      %p159 = por %p157, %p158
      %p160 = scmp.ne.s32.totalorder %s151, %s152
      %p161 = scmp.eq.s32.totalorder %s26, 0
      %p162 = por %p160, %p161
      %p163 = scmp.ne.s32.totalorder %s151, %s152
      %p164 = scmp.eq.s32.totalorder %s27, 1
      %p165 = por %p163, %p164
      %p167 = scmp.ne.s32.totalorder %s152, %s166
      %p168 = scmp.eq.s32.totalorder %s27, 0
      %p169 = por %p167, %p168
      %s171 = sadd.s32 %s170, 1
      %p174 = scmp.eq.s32.totalorder %s21, 1
      %p175 = scmp.ne.s32.totalorder %s170, %s172
      %p176 = scmp.eq.s32.totalorder %s21, 0
      %p177 = por %p175, %p176
      %p178 = scmp.ne.s32.totalorder %s170, %s172
      %p179 = scmp.eq.s32.totalorder %s26, 1
      %p180 = por %p178, %p179
      %p181 = scmp.ne.s32.totalorder %s172, %s173
      %p182 = scmp.eq.s32.totalorder %s26, 0
      %p183 = por %p181, %p182
      %p184 = scmp.ne.s32.totalorder %s172, %s173
      %p185 = scmp.eq.s32.totalorder %s27, 1
      %p186 = por %p184, %p185
      %p188 = scmp.ne.s32.totalorder %s173, %s187
      %p189 = scmp.eq.s32.totalorder %s27, 0
      %p190 = por %p188, %p189
      %s192 = sadd.s32 %s191, 1
      %p195 = scmp.eq.s32.totalorder %s21, 1
      %p196 = scmp.ne.s32.totalorder %s191, %s193
      %p197 = scmp.eq.s32.totalorder %s21, 0
      %p198 = por %p196, %p197
      %p199 = scmp.ne.s32.totalorder %s191, %s193
      %p200 = scmp.eq.s32.totalorder %s26, 1
      %p201 = por %p199, %p200
      %p202 = scmp.ne.s32.totalorder %s193, %s194
      %p203 = scmp.eq.s32.totalorder %s26, 0
      %p204 = por %p202, %p203
      %p205 = scmp.ne.s32.totalorder %s193, %s194
      %p206 = scmp.eq.s32.totalorder %s27, 1
      %p207 = por %p205, %p206
      %p209 = scmp.ne.s32.totalorder %s194, %s208
      %p210 = scmp.eq.s32.totalorder %s27, 0
      %p211 = por %p209, %p210
      %s212 = ssub.s32 %s21, %s28
      %p213 = scmp.eq.s32.totalorder %s212, 0
      %s215 = sadd.s32 %s214, 1
      %s216 = scalar_select %p213, %s214, %s215
      %p219 = pneg %p213
      %p220 = scmp.eq.s32.totalorder %s21, 1
      %p221 = por %p219, %p220
      %p222 = scmp.ne.s32.totalorder %s214, %s217
      %p223 = scmp.eq.s32.totalorder %s21, 0
      %p224 = por %p222, %p223
      %p225 = scmp.ne.s32.totalorder %s214, %s217
      %p226 = scmp.eq.s32.totalorder %s26, 1
      %p227 = por %p225, %p226
      %p228 = scmp.ne.s32.totalorder %s217, %s218
      %p229 = scmp.eq.s32.totalorder %s26, 0
      %p230 = por %p228, %p229
      %p231 = scmp.ne.s32.totalorder %s217, %s218
      %p232 = scmp.eq.s32.totalorder %s27, 1
      %p233 = por %p231, %p232
      %p235 = scmp.ne.s32.totalorder %s218, %s234
      %p236 = scmp.eq.s32.totalorder %s27, 0
      %p237 = por %p235, %p236
      %p238 = scmp.le.s32.totalorder 1, %s21
      %p239 = scmp.lt.s32.totalorder %s21, 3
      %p240 = pnand %p238, %p239
      %p241 = pneg %p240
      // Predicated region
      $region9: #{tpu_custom_call.1} parent=5 // pred_check
        _
      $region10: #{tpu_custom_call.1} parent=5 // pred_check_branch
        %243 = sbr.rel (%p240) target = $region12
      $region11: #{tpu_custom_call.1} parent=5 // pred_region
        %s244 = ssub.s32 %s21, 1
        // Predicated region
        $region13: #{tpu_custom_call.1} parent=11 // pred_check
          %p245 = pneg %p120
        $region14: #{tpu_custom_call.1} parent=11 // pred_check_branch
          %247 = sbr.rel (%p245) target = $region16
        $region15: #{tpu_custom_call.1} parent=11 // pred_region
          %s249 = ssub.s32 1024, 1024
          %250 = vsyncadd [#allocation6], %s249
          %s251 = sshll.u32 [#allocation5], 4
          %s252 = int_to_ptr.vmem [resolvable:$true] %s251
          %257 = dma.hbm_to_vmem [thread:$0]  %s3, 1024, %s252, [#allocation6], 64, 64, 4
        $region16: #{tpu_custom_call.1} parent=11 // pred_fallthru
          _
        // Predicated region
        $region17: #{tpu_custom_call.1} parent=11 // pred_check
          %p258 = pneg %p141
        $region18: #{tpu_custom_call.1} parent=11 // pred_check_branch
          %260 = sbr.rel (%p258) target = $region20
        $region19: #{tpu_custom_call.1} parent=11 // pred_region
          _
        $region20: #{tpu_custom_call.1} parent=11 // pred_fallthru
          _
        // Predicated region
        $region21: #{tpu_custom_call.1} parent=11 // pred_check
          %p261 = pneg %p162
        $region22: #{tpu_custom_call.1} parent=11 // pred_check_branch
          %263 = sbr.rel (%p261) target = $region24
        $region23: #{tpu_custom_call.1} parent=11 // pred_region
          %s265 = ssub.s32 1024, 1024
          %266 = vsyncadd [#allocation6], %s265
          %s267 = sshll.u32 [#allocation7], 4
          %s268 = int_to_ptr.vmem [resolvable:$true] %s267
          %273 = dma.hbm_to_vmem [thread:$0]  %s5, 1024, %s268, [#allocation6], 64, 64, 4
        $region24: #{tpu_custom_call.1} parent=11 // pred_fallthru
          _
        // Predicated region
        $region25: #{tpu_custom_call.1} parent=11 // pred_check
          %p274 = pneg %p183
        $region26: #{tpu_custom_call.1} parent=11 // pred_check_branch
          %276 = sbr.rel (%p274) target = $region28
        $region27: #{tpu_custom_call.1} parent=11 // pred_region
          _
        $region28: #{tpu_custom_call.1} parent=11 // pred_fallthru
          _
        // Predicated region
        $region29: #{tpu_custom_call.1} parent=11 // pred_check
          %p277 = pneg %p204
        $region30: #{tpu_custom_call.1} parent=11 // pred_check_branch
          %279 = sbr.rel (%p277) target = $region32
        $region31: #{tpu_custom_call.1} parent=11 // pred_region
          _
        $region32: #{tpu_custom_call.1} parent=11 // pred_fallthru
          _
      $region12: #{tpu_custom_call.1} parent=5 // pred_fallthru
        _
      %p280 = scmp.lt.s32.totalorder %s21, 2
      // Predicated region
      $region33: #{tpu_custom_call.1} parent=5 // pred_check
        %p281 = pneg %p280
      $region34: #{tpu_custom_call.1} parent=5 // pred_check_branch
        %283 = sbr.rel (%p281) target = $region36
      $region35: #{tpu_custom_call.1} parent=5 // pred_region
        // Predicated region
        $region37: #{tpu_custom_call.1} parent=35 // pred_check
          %p284 = pneg %p41
        $region38: #{tpu_custom_call.1} parent=35 // pred_check_branch
          %286 = sbr.rel (%p284) target = $region40
        $region39: #{tpu_custom_call.1} parent=35 // pred_region
          %s287 = sand.u32 %s31, 1
          %s288 = scalar_lea.sflag [#allocation3], %s287
          %s289 = sand.u32 %s31, 1
          %s290 = smul.addr %s289, 128
          %s291 = scalar_lea.vmem [#allocation2], %s290
          %s292 = smul.u32 32, %s21
          %s294 = ssub.s32 2048, 2048
          %295 = vsyncadd %s288, %s294
          %s296 = smul.addr %s292, 64
          %s297 = scalar_lea.hbm %s0, %s296
          %s298 = sshll.u32 %s291, 4
          %s299 = int_to_ptr.vmem [resolvable:$true] %s298
          %304 = dma.hbm_to_vmem [thread:$0]  %s297, 2048, %s299, %s288, 64, 64, 4
        $region40: #{tpu_custom_call.1} parent=35 // pred_fallthru
          _
        // Predicated region
        $region41: #{tpu_custom_call.1} parent=35 // pred_check
          %p305 = pneg %p67
        $region42: #{tpu_custom_call.1} parent=35 // pred_check_branch
          %307 = sbr.rel (%p305) target = $region44
        $region43: #{tpu_custom_call.1} parent=35 // pred_region
          %s308 = smul.u32 32, %s21
          %p309 = scmp.lt.s32.totalorder %s308, 63
          %s310 = scalar_select %p309, %s308, 63
          %s311 = smul.addr %s310, 8
          %s312 = scalar_lea.vmem %s1, %s311
          %s313 = smul.u32 32, %s21
        $region44: #{tpu_custom_call.1} parent=35 // pred_fallthru
          _
        // Predicated region
        $region45: #{tpu_custom_call.1} parent=35 // pred_check
          %p314 = pneg %p93
        $region46: #{tpu_custom_call.1} parent=35 // pred_check_branch
          %316 = sbr.rel (%p314) target = $region48
        $region47: #{tpu_custom_call.1} parent=35 // pred_region
          %s317 = smul.u32 32, %s21
          %p318 = scmp.lt.s32.totalorder %s317, 63
          %s319 = scalar_select %p318, %s317, 63
          %s320 = smul.addr %s319, 8
          %s321 = scalar_lea.vmem %s2, %s320
          %s322 = smul.u32 32, %s21
        $region48: #{tpu_custom_call.1} parent=35 // pred_fallthru
          _
      $region36: #{tpu_custom_call.1} parent=5 // pred_fallthru
        _
      %p323 = scmp.le.s32.totalorder 1, %s21
      %p324 = scmp.lt.s32.totalorder %s21, 3
      %p325 = pnand %p323, %p324
      %p326 = pneg %p325
      // Predicated region
      $region49: #{tpu_custom_call.1} parent=5 // pred_check
        _
      $region50: #{tpu_custom_call.1} parent=5 // pred_check_branch
        %328 = sbr.rel (%p325) target = $region52
      $region51: #{tpu_custom_call.1} parent=5 // pred_region
        %s329 = ssub.s32 %s21, 1
        %s330 = sand.u32 %s34, 1
        %s331 = scalar_lea.sflag [#allocation3], %s330
        %s332 = sand.u32 %s34, 1
        %s333 = smul.addr %s332, 128
        %s334 = scalar_lea.vmem [#allocation2], %s333
        // Predicated region
        $region53: #{tpu_custom_call.1} parent=51 // pred_check
          %p335 = pneg %p47
        $region54: #{tpu_custom_call.1} parent=51 // pred_check_branch
          %337 = sbr.rel (%p335) target = $region56
        $region55: #{tpu_custom_call.1} parent=51 // pred_region
          %338 = dma.done %s331, 2048
        $region56: #{tpu_custom_call.1} parent=51 // pred_fallthru
          _
        // Predicated region
        $region57: #{tpu_custom_call.1} parent=51 // pred_check
          %p339 = pneg %p120
        $region58: #{tpu_custom_call.1} parent=51 // pred_check_branch
          %341 = sbr.rel (%p339) target = $region60
        $region59: #{tpu_custom_call.1} parent=51 // pred_region
          %342 = dma.done [#allocation6], 1024
        $region60: #{tpu_custom_call.1} parent=51 // pred_fallthru
          _
        // Predicated region
        $region61: #{tpu_custom_call.1} parent=51 // pred_check
          %p343 = pneg %p162
        $region62: #{tpu_custom_call.1} parent=51 // pred_check_branch
          %345 = sbr.rel (%p343) target = $region64
        $region63: #{tpu_custom_call.1} parent=51 // pred_region
          %346 = dma.done [#allocation6], 1024
        $region64: #{tpu_custom_call.1} parent=51 // pred_fallthru
          _
        %s347 = sand.u32 %s34, 1
        %s348 = scalar_lea.sflag [#allocation3], %s347
        %s349 = sand.u32 %s34, 1
        %s350 = smul.addr %s349, 128
        %s351 = scalar_lea.vmem [#allocation2], %s350
        %p352 = pneg %p47
        %p353 = pneg %p44
        %s354 = smul.u32 32, %s26
        %p355 = scmp.lt.s32.totalorder %s354, 63
        %s356 = scalar_select %p355, %s354, 63
        %s357 = smul.addr %s356, 8
        %s358 = scalar_lea.vmem %s1, %s357
        %p359 = pneg %p73
        %p360 = pneg %p70
        %s361 = smul.u32 32, %s26
        %p362 = scmp.lt.s32.totalorder %s361, 63
        %s363 = scalar_select %p362, %s361, 63
        %s364 = smul.addr %s363, 8
        %s365 = scalar_lea.vmem %s2, %s364
        %p366 = pneg %p99
        %p367 = pneg %p96
        %p368 = pneg %p120
        %p369 = pneg %p117
        %p370 = pneg %p141
        %p371 = pneg %p138
        %p372 = pneg %p162
        %p373 = pneg %p159
        %p374 = pneg %p183
        %p375 = pneg %p180
        %p376 = pneg %p204
        %p377 = pneg %p201
        %p378 = pneg %p230
        %p379 = pneg %p227
        %s380 = sand.u32 %s217, 1
        %s381 = scalar_lea.sflag [#allocation4], %s380
        %s382 = sand.u32 %s217, 1
        %s383 = smul.addr %s382, 8
        %s384 = scalar_lea.vmem [#allocation8], %s383
        %s385 = smul.u32 32, %s26
        %s386 = smul.u32 32, %s26
        %p387 = scmp.lt.s32.totalorder %s386, 63
        %s388 = scalar_select %p387, %s386, 63
        %s389 = smul.addr %s388, 8
        %s390 = scalar_lea.vmem %s1, %s389
        %s391 = smul.u32 32, %s26
        %s392 = smul.u32 32, %s26
        %p393 = scmp.lt.s32.totalorder %s392, 63
        %s394 = scalar_select %p393, %s392, 63
        %s395 = smul.addr %s394, 8
        %s396 = scalar_lea.vmem %s2, %s395
        %s397 = smul.u32 32, %s26
        %v399 = vld [vmem:[%s334] sm:$0xf]
        %v400 = vld [vmem:[%s334 + $0x4] sm:$0xf]
        %v401 = vld [vmem:[%s334 + $0x8] sm:$0xf]
        %v402 = vld [vmem:[%s334 + $0xc] sm:$0xf]
        %v403 = vld [vmem:[%s334 + $0x10] sm:$0xf]
        %v404 = vld [vmem:[%s334 + $0x14] sm:$0xf]
        %v405 = vld [vmem:[%s334 + $0x18] sm:$0xf]
        %v406 = vld [vmem:[%s334 + $0x1c] sm:$0xf]
        %v407 = vld [vmem:[%s334 + $0x20] sm:$0xf]
        %v408 = vld [vmem:[%s334 + $0x24] sm:$0xf]
        %v409 = vld [vmem:[%s334 + $0x28] sm:$0xf]
        %v410 = vld [vmem:[%s334 + $0x2c] sm:$0xf]
        %v411 = vld [vmem:[%s334 + $0x30] sm:$0xf]
        %v412 = vld [vmem:[%s334 + $0x34] sm:$0xf]
        %v413 = vld [vmem:[%s334 + $0x38] sm:$0xf]
        %v414 = vld [vmem:[%s334 + $0x3c] sm:$0xf]
        %v415 = vld [vmem:[%s334 + $0x40] sm:$0xf]
        %v416 = vld [vmem:[%s334 + $0x44] sm:$0xf]
        %v417 = vld [vmem:[%s334 + $0x48] sm:$0xf]
        %v418 = vld [vmem:[%s334 + $0x4c] sm:$0xf]
        %v419 = vld [vmem:[%s334 + $0x50] sm:$0xf]
        %v420 = vld [vmem:[%s334 + $0x54] sm:$0xf]
        %v421 = vld [vmem:[%s334 + $0x58] sm:$0xf]
        %v422 = vld [vmem:[%s334 + $0x5c] sm:$0xf]
        %v423 = vld [vmem:[%s334 + $0x60] sm:$0xf]
        %v424 = vld [vmem:[%s334 + $0x64] sm:$0xf]
        %v425 = vld [vmem:[%s334 + $0x68] sm:$0xf]
        %v426 = vld [vmem:[%s334 + $0x6c] sm:$0xf]
        %v427 = vld [vmem:[%s334 + $0x70] sm:$0xf]
        %v428 = vld [vmem:[%s334 + $0x74] sm:$0xf]
        %v429 = vld [vmem:[%s334 + $0x78] sm:$0xf]
        %v430 = vld [vmem:[%s334 + $0x7c] sm:$0xf]
        %v431 = vld [vmem:[#allocation5] sm:$0xf]
        %v432 = vld [vmem:[#allocation5 + $0x4] sm:$0xf]
        %v433 = vld [vmem:[#allocation5 + $0x8] sm:$0xf]
        %v434 = vld [vmem:[#allocation5 + $0xc] sm:$0xf]
        %v435 = vld [vmem:[#allocation5 + $0x10] sm:$0xf]
        %v436 = vld [vmem:[#allocation5 + $0x14] sm:$0xf]
        %v437 = vld [vmem:[#allocation5 + $0x18] sm:$0xf]
        %v438 = vld [vmem:[#allocation5 + $0x1c] sm:$0xf]
        %v439 = vld [vmem:[#allocation5 + $0x20] sm:$0xf]
        %v440 = vld [vmem:[#allocation5 + $0x24] sm:$0xf]
        %v441 = vld [vmem:[#allocation5 + $0x28] sm:$0xf]
        %v442 = vld [vmem:[#allocation5 + $0x2c] sm:$0xf]
        %v443 = vld [vmem:[#allocation5 + $0x30] sm:$0xf]
        %v444 = vld [vmem:[#allocation5 + $0x34] sm:$0xf]
        %v445 = vld [vmem:[#allocation5 + $0x38] sm:$0xf]
        %v446 = vld [vmem:[#allocation5 + $0x3c] sm:$0xf]
        %v447 = vld [vmem:[%s4] sm:$0x1]
        %v449 = vlaneseq
        %v450 = vshrl.u32 %v449, 7
        %v451 = vsub.s32 0, %v450
        %v452 = vrot.slane %v447, %v451
        %v486 = vunpack.c.l.b16 %v399
        %v487 = vunpack.c.l.b16 %v400
        %v488 = vunpack.c.l.b16 %v401
        %v489 = vunpack.c.l.b16 %v402
        %v490 = vunpack.c.l.b16 %v403
        %v491 = vunpack.c.l.b16 %v404
        %v492 = vunpack.c.l.b16 %v405
        %v493 = vunpack.c.l.b16 %v406
        %v494 = vunpack.c.l.b16 %v407
        %v495 = vunpack.c.l.b16 %v408
        %v496 = vunpack.c.l.b16 %v409
        %v497 = vunpack.c.l.b16 %v410
        %v498 = vunpack.c.l.b16 %v411
        %v499 = vunpack.c.l.b16 %v412
        %v500 = vunpack.c.l.b16 %v413
        %v501 = vunpack.c.l.b16 %v414
        %v502 = vunpack.c.l.b16 %v415
        %v503 = vunpack.c.l.b16 %v416
        %v504 = vunpack.c.l.b16 %v417
        %v505 = vunpack.c.l.b16 %v418
        %v506 = vunpack.c.l.b16 %v419
        %v507 = vunpack.c.l.b16 %v420
        %v508 = vunpack.c.l.b16 %v421
        %v509 = vunpack.c.l.b16 %v422
        %v510 = vunpack.c.l.b16 %v423
        %v511 = vunpack.c.l.b16 %v424
        %v512 = vunpack.c.l.b16 %v425
        %v513 = vunpack.c.l.b16 %v426
        %v514 = vunpack.c.l.b16 %v427
        %v515 = vunpack.c.l.b16 %v428
        %v516 = vunpack.c.l.b16 %v429
        %v517 = vunpack.c.l.b16 %v430
        %v518 = vpack.c.b16 %v487, %v486
        %v519 = vpack.c.b16 %v489, %v488
        %v520 = vpack.c.b16 %v491, %v490
        %v521 = vpack.c.b16 %v493, %v492
        %v522 = vpack.c.b16 %v495, %v494
        %v523 = vpack.c.b16 %v497, %v496
        %v524 = vpack.c.b16 %v499, %v498
        %v525 = vpack.c.b16 %v501, %v500
        %v526 = vpack.c.b16 %v503, %v502
        %v527 = vpack.c.b16 %v505, %v504
        %v528 = vpack.c.b16 %v507, %v506
        %v529 = vpack.c.b16 %v509, %v508
        %v530 = vpack.c.b16 %v511, %v510
        %v531 = vpack.c.b16 %v513, %v512
        %v532 = vpack.c.b16 %v515, %v514
        %v533 = vpack.c.b16 %v517, %v516
        %v566 = vunpack.c.l.b16 %v431
        %v567 = vunpack.c.l.b16 %v432
        %v568 = vunpack.c.l.b16 %v433
        %v569 = vunpack.c.l.b16 %v434
        %v570 = vunpack.c.l.b16 %v435
        %v571 = vunpack.c.l.b16 %v436
        %v572 = vunpack.c.l.b16 %v437
        %v573 = vunpack.c.l.b16 %v438
        %v574 = vunpack.c.l.b16 %v439
        %v575 = vunpack.c.l.b16 %v440
        %v576 = vunpack.c.l.b16 %v441
        %v577 = vunpack.c.l.b16 %v442
        %v578 = vunpack.c.l.b16 %v443
        %v579 = vunpack.c.l.b16 %v444
        %v580 = vunpack.c.l.b16 %v445
        %v581 = vunpack.c.l.b16 %v446
        %v582 = vpack.c.b16 %v567, %v566
        %v583 = vpack.c.b16 %v569, %v568
        %v584 = vpack.c.b16 %v571, %v570
        %v585 = vpack.c.b16 %v573, %v572
        %v586 = vpack.c.b16 %v575, %v574
        %v587 = vpack.c.b16 %v577, %v576
        %v588 = vpack.c.b16 %v579, %v578
        %v589 = vpack.c.b16 %v581, %v580
        %598 = vmatprep.subr.bf16.mxu0 0
        %599 = vmatpush1.bf16.msra.mxu0 %v582
        %600 = vmatprep.subr.bf16.mxu0 0
        %601 = vmatpush1.bf16.msra.mxu0 %v583
        %602 = vmatprep.subr.bf16.mxu0 0
        %603 = vmatpush1.bf16.msra.mxu0 %v584
        %604 = vmatprep.subr.bf16.mxu0 0
        %605 = vmatpush1.bf16.msra.mxu0 %v585
        %606 = vmatprep.subr.bf16.mxu0 0
        %607 = vmatpush1.bf16.msra.mxu0 %v586
        %608 = vmatprep.subr.bf16.mxu0 0
        %609 = vmatpush1.bf16.msra.mxu0 %v587
        %610 = vmatprep.subr.bf16.mxu0 0
        %611 = vmatpush1.bf16.msra.mxu0 %v588
        %612 = vmatprep.subr.bf16.mxu0 0
        %613 = vmatpush1.bf16.msra.mxu0 %v589
        %614 = vmatprep.subr.bf16.mxu0 0
        %615 = vmatpush1.bf16.msra.mxu0 0
        %616 = vmatprep.subr.bf16.mxu0 0
        %617 = vmatpush1.bf16.msra.mxu0 0
        %618 = vmatprep.subr.bf16.mxu0 0
        %619 = vmatpush1.bf16.msra.mxu0 0
        %620 = vmatprep.subr.bf16.mxu0 0
        %621 = vmatpush1.bf16.msra.mxu0 0
        %622 = vmatprep.subr.bf16.mxu0 0
        %623 = vmatpush1.bf16.msra.mxu0 0
        %624 = vmatprep.subr.bf16.mxu0 0
        %625 = vmatpush1.bf16.msra.mxu0 0
        %626 = vmatprep.subr.bf16.mxu0 0
        %627 = vmatpush1.bf16.msra.mxu0 0
        %628 = vmatprep.subr.bf16.mxu0 0
        %629 = vmatpush1.bf16.msra.mxu0 0
        %630 = vmatprep.mubr.bf16.mxu0 0
        %631 = vmatmul.mubr.bf16.gmra.mrb[0].mxu0 %v518
        %v632 = vpop.f32.mrb[0].mxu0
        %v633 = vadd.f32 %v452, %v632
        %v634 = vpop.f32.mrb[0].mxu0
        %v635 = vpop.f32.mrb[0].mxu0
        %v636 = vadd.f32 %v452, %v635
        %v637 = vpop.f32.mrb[0].mxu0
        %638 = vmatprep.mubr.bf16.mxu0 0
        %639 = vmatmul.mubr.bf16.gmra.mrb[0].mxu0 %v519
        %v640 = vpop.f32.mrb[0].mxu0
        %v641 = vadd.f32 %v452, %v640
        %v642 = vpop.f32.mrb[0].mxu0
        %v643 = vpop.f32.mrb[0].mxu0
        %v644 = vadd.f32 %v452, %v643
        %v645 = vpop.f32.mrb[0].mxu0
        %646 = vmatprep.mubr.bf16.mxu0 0
        %647 = vmatmul.mubr.bf16.gmra.mrb[0].mxu0 %v520
        %v648 = vpop.f32.mrb[0].mxu0
        %v649 = vadd.f32 %v452, %v648
        %v650 = vpop.f32.mrb[0].mxu0
        %v651 = vpop.f32.mrb[0].mxu0
        %v652 = vadd.f32 %v452, %v651
        %v653 = vpop.f32.mrb[0].mxu0
        %654 = vmatprep.mubr.bf16.mxu0 0
        %655 = vmatmul.mubr.bf16.gmra.mrb[0].mxu0 %v521
        %v656 = vpop.f32.mrb[0].mxu0
        %v657 = vadd.f32 %v452, %v656
        %v658 = vpop.f32.mrb[0].mxu0
        %v659 = vpop.f32.mrb[0].mxu0
        %v660 = vadd.f32 %v452, %v659
        %v661 = vpop.f32.mrb[0].mxu0
        %662 = vmatprep.mubr.bf16.mxu0 0
        %663 = vmatmul.mubr.bf16.gmra.mrb[0].mxu0 %v522
        %v664 = vpop.f32.mrb[0].mxu0
        %v665 = vadd.f32 %v452, %v664
        %v666 = vpop.f32.mrb[0].mxu0
        %v667 = vpop.f32.mrb[0].mxu0
        %v668 = vadd.f32 %v452, %v667
        %v669 = vpop.f32.mrb[0].mxu0
        %670 = vmatprep.mubr.bf16.mxu0 0
        %671 = vmatmul.mubr.bf16.gmra.mrb[0].mxu0 %v523
        %v672 = vpop.f32.mrb[0].mxu0
        %v673 = vadd.f32 %v452, %v672
        %v674 = vpop.f32.mrb[0].mxu0
        %v675 = vpop.f32.mrb[0].mxu0
        %v676 = vadd.f32 %v452, %v675
        %v677 = vpop.f32.mrb[0].mxu0
        %678 = vmatprep.mubr.bf16.mxu0 0
        %679 = vmatmul.mubr.bf16.gmra.mrb[0].mxu0 %v524
        %v680 = vpop.f32.mrb[0].mxu0
        %v681 = vadd.f32 %v452, %v680
        %v682 = vpop.f32.mrb[0].mxu0
        %v683 = vpop.f32.mrb[0].mxu0
        %v684 = vadd.f32 %v452, %v683
        %v685 = vpop.f32.mrb[0].mxu0
        %686 = vmatprep.mubr.bf16.mxu0 0
        %687 = vmatmul.mubr.bf16.gmra.mrb[0].mxu0 %v525
        %v688 = vpop.f32.mrb[0].mxu0
        %v689 = vadd.f32 %v452, %v688
        %v690 = vpop.f32.mrb[0].mxu0
        %v691 = vpop.f32.mrb[0].mxu0
        %v692 = vadd.f32 %v452, %v691
        %v693 = vpop.f32.mrb[0].mxu0
        %694 = vmatprep.mubr.bf16.mxu0 0
        %695 = vmatmul.mubr.bf16.gmra.mrb[0].mxu0 %v526
        %v696 = vpop.f32.mrb[0].mxu0
        %v697 = vadd.f32 %v452, %v696
        %v698 = vpop.f32.mrb[0].mxu0
        %v699 = vpop.f32.mrb[0].mxu0
        %v700 = vadd.f32 %v452, %v699
        %v701 = vpop.f32.mrb[0].mxu0
        %702 = vmatprep.mubr.bf16.mxu0 0
        %703 = vmatmul.mubr.bf16.gmra.mrb[0].mxu0 %v527
        %v704 = vpop.f32.mrb[0].mxu0
        %v705 = vadd.f32 %v452, %v704
        %v706 = vpop.f32.mrb[0].mxu0
        %v707 = vpop.f32.mrb[0].mxu0
        %v708 = vadd.f32 %v452, %v707
        %v709 = vpop.f32.mrb[0].mxu0
        %710 = vmatprep.mubr.bf16.mxu0 0
        %711 = vmatmul.mubr.bf16.gmra.mrb[0].mxu0 %v528
        %v712 = vpop.f32.mrb[0].mxu0
        %v713 = vadd.f32 %v452, %v712
        %v714 = vpop.f32.mrb[0].mxu0
        %v715 = vpop.f32.mrb[0].mxu0
        %v716 = vadd.f32 %v452, %v715
        %v717 = vpop.f32.mrb[0].mxu0
        %718 = vmatprep.mubr.bf16.mxu0 0
        %719 = vmatmul.mubr.bf16.gmra.mrb[0].mxu0 %v529
        %v720 = vpop.f32.mrb[0].mxu0
        %v721 = vadd.f32 %v452, %v720
        %v722 = vpop.f32.mrb[0].mxu0
        %v723 = vpop.f32.mrb[0].mxu0
        %v724 = vadd.f32 %v452, %v723
        %v725 = vpop.f32.mrb[0].mxu0
        %726 = vmatprep.mubr.bf16.mxu0 0
        %727 = vmatmul.mubr.bf16.gmra.mrb[0].mxu0 %v530
        %v728 = vpop.f32.mrb[0].mxu0
        %v729 = vadd.f32 %v452, %v728
        %v730 = vpop.f32.mrb[0].mxu0
        %v731 = vpop.f32.mrb[0].mxu0
        %v732 = vadd.f32 %v452, %v731
        %v733 = vpop.f32.mrb[0].mxu0
        %734 = vmatprep.mubr.bf16.mxu0 0
        %735 = vmatmul.mubr.bf16.gmra.mrb[0].mxu0 %v531
        %v736 = vpop.f32.mrb[0].mxu0
        %v737 = vadd.f32 %v452, %v736
        %v738 = vpop.f32.mrb[0].mxu0
        %v739 = vpop.f32.mrb[0].mxu0
        %v740 = vadd.f32 %v452, %v739
        %v741 = vpop.f32.mrb[0].mxu0
        %742 = vmatprep.mubr.bf16.mxu0 0
        %743 = vmatmul.mubr.bf16.gmra.mrb[0].mxu0 %v532
        %v744 = vpop.f32.mrb[0].mxu0
        %v745 = vadd.f32 %v452, %v744
        %v746 = vpop.f32.mrb[0].mxu0
        %v747 = vpop.f32.mrb[0].mxu0
        %v748 = vadd.f32 %v452, %v747
        %v749 = vpop.f32.mrb[0].mxu0
        %750 = vmatprep.mubr.bf16.mxu0 0
        %751 = vmatmul.mubr.bf16.gmra.mrb[0].mxu0 %v533
        %v752 = vpop.f32.mrb[0].mxu0
        %v753 = vadd.f32 %v452, %v752
        %v754 = vpop.f32.mrb[0].mxu0
        %v755 = vpop.f32.mrb[0].mxu0
        %v756 = vadd.f32 %v452, %v755
        %v757 = vpop.f32.mrb[0].mxu0
        %758 = vdwg.mxu0
        %v759 = vpack.c.bf16 %v636, %v633
        %v760 = vpack.c.bf16 %v644, %v641
        %v761 = vpack.c.bf16 %v652, %v649
        %v762 = vpack.c.bf16 %v660, %v657
        %v763 = vpack.c.bf16 %v668, %v665
        %v764 = vpack.c.bf16 %v676, %v673
        %v765 = vpack.c.bf16 %v684, %v681
        %v766 = vpack.c.bf16 %v692, %v689
        %v767 = vpack.c.bf16 %v700, %v697
        %v768 = vpack.c.bf16 %v708, %v705
        %v769 = vpack.c.bf16 %v716, %v713
        %v770 = vpack.c.bf16 %v724, %v721
        %v771 = vpack.c.bf16 %v732, %v729
        %v772 = vpack.c.bf16 %v740, %v737
        %v773 = vpack.c.bf16 %v748, %v745
        %v774 = vpack.c.bf16 %v756, %v753
        %v775 = vld [vmem:[#allocation7] sm:$0xf]
        %v776 = vld [vmem:[#allocation7 + $0x4] sm:$0xf]
        %v777 = vld [vmem:[#allocation7 + $0x8] sm:$0xf]
        %v778 = vld [vmem:[#allocation7 + $0xc] sm:$0xf]
        %v779 = vld [vmem:[#allocation7 + $0x10] sm:$0xf]
        %v780 = vld [vmem:[#allocation7 + $0x14] sm:$0xf]
        %v781 = vld [vmem:[#allocation7 + $0x18] sm:$0xf]
        %v782 = vld [vmem:[#allocation7 + $0x1c] sm:$0xf]
        %v783 = vld [vmem:[#allocation7 + $0x20] sm:$0xf]
        %v784 = vld [vmem:[#allocation7 + $0x24] sm:$0xf]
        %v785 = vld [vmem:[#allocation7 + $0x28] sm:$0xf]
        %v786 = vld [vmem:[#allocation7 + $0x2c] sm:$0xf]
        %v787 = vld [vmem:[#allocation7 + $0x30] sm:$0xf]
        %v788 = vld [vmem:[#allocation7 + $0x34] sm:$0xf]
        %v789 = vld [vmem:[#allocation7 + $0x38] sm:$0xf]
        %v790 = vld [vmem:[#allocation7 + $0x3c] sm:$0xf]
        %v791 = vld [vmem:[%s6] sm:$0x1]
        %v793 = vlaneseq
        %v794 = vshrl.u32 %v793, 7
        %v795 = vsub.s32 0, %v794
        %v796 = vrot.slane %v791, %v795
        %v814 = vunpack.c.l.b16 %v775
        %v815 = vunpack.c.l.b16 %v776
        %v816 = vunpack.c.l.b16 %v777
        %v817 = vunpack.c.l.b16 %v778
        %v818 = vunpack.c.l.b16 %v779
        %v819 = vunpack.c.l.b16 %v780
        %v820 = vunpack.c.l.b16 %v781
        %v821 = vunpack.c.l.b16 %v782
        %v822 = vunpack.c.l.b16 %v783
        %v823 = vunpack.c.l.b16 %v784
        %v824 = vunpack.c.l.b16 %v785
        %v825 = vunpack.c.l.b16 %v786
        %v826 = vunpack.c.l.b16 %v787
        %v827 = vunpack.c.l.b16 %v788
        %v828 = vunpack.c.l.b16 %v789
        %v829 = vunpack.c.l.b16 %v790
        %v830 = vpack.c.b16 %v815, %v814
        %v831 = vpack.c.b16 %v817, %v816
        %v832 = vpack.c.b16 %v819, %v818
        %v833 = vpack.c.b16 %v821, %v820
        %v834 = vpack.c.b16 %v823, %v822
        %v835 = vpack.c.b16 %v825, %v824
        %v836 = vpack.c.b16 %v827, %v826
        %v837 = vpack.c.b16 %v829, %v828
        %846 = vmatprep.subr.bf16.mxu0 0
        %847 = vmatpush1.bf16.msra.mxu0 %v830
        %848 = vmatprep.subr.bf16.mxu0 0
        %849 = vmatpush1.bf16.msra.mxu0 %v831
        %850 = vmatprep.subr.bf16.mxu0 0
        %851 = vmatpush1.bf16.msra.mxu0 %v832
        %852 = vmatprep.subr.bf16.mxu0 0
        %853 = vmatpush1.bf16.msra.mxu0 %v833
        %854 = vmatprep.subr.bf16.mxu0 0
        %855 = vmatpush1.bf16.msra.mxu0 %v834
        %856 = vmatprep.subr.bf16.mxu0 0
        %857 = vmatpush1.bf16.msra.mxu0 %v835
        %858 = vmatprep.subr.bf16.mxu0 0
        %859 = vmatpush1.bf16.msra.mxu0 %v836
        %860 = vmatprep.subr.bf16.mxu0 0
        %861 = vmatpush1.bf16.msra.mxu0 %v837
        %862 = vmatprep.subr.bf16.mxu0 0
        %863 = vmatpush1.bf16.msra.mxu0 0
        %864 = vmatprep.subr.bf16.mxu0 0
        %865 = vmatpush1.bf16.msra.mxu0 0
        %866 = vmatprep.subr.bf16.mxu0 0
        %867 = vmatpush1.bf16.msra.mxu0 0
        %868 = vmatprep.subr.bf16.mxu0 0
        %869 = vmatpush1.bf16.msra.mxu0 0
        %870 = vmatprep.subr.bf16.mxu0 0
        %871 = vmatpush1.bf16.msra.mxu0 0
        %872 = vmatprep.subr.bf16.mxu0 0
        %873 = vmatpush1.bf16.msra.mxu0 0
        %874 = vmatprep.subr.bf16.mxu0 0
        %875 = vmatpush1.bf16.msra.mxu0 0
        %876 = vmatprep.subr.bf16.mxu0 0
        %877 = vmatpush1.bf16.msra.mxu0 0
        %878 = vmatprep.mubr.bf16.mxu0 0
        %879 = vmatmul.mubr.bf16.gmra.mrb[0].mxu0 %v759
        %v880 = vpop.f32.mrb[0].mxu0
        %v881 = vadd.f32 %v796, %v880
        %v882 = vpop.f32.mrb[0].mxu0
        %v883 = vpop.f32.mrb[0].mxu0
        %v884 = vadd.f32 %v796, %v883
        %v885 = vpop.f32.mrb[0].mxu0
        %886 = vmatprep.mubr.bf16.mxu0 0
        %887 = vmatmul.mubr.bf16.gmra.mrb[0].mxu0 %v760
        %v888 = vpop.f32.mrb[0].mxu0
        %v889 = vadd.f32 %v796, %v888
        %v890 = vpop.f32.mrb[0].mxu0
        %v891 = vpop.f32.mrb[0].mxu0
        %v892 = vadd.f32 %v796, %v891
        %v893 = vpop.f32.mrb[0].mxu0
        %894 = vmatprep.mubr.bf16.mxu0 0
        %895 = vmatmul.mubr.bf16.gmra.mrb[0].mxu0 %v761
        %v896 = vpop.f32.mrb[0].mxu0
        %v897 = vadd.f32 %v796, %v896
        %v898 = vpop.f32.mrb[0].mxu0
        %v899 = vpop.f32.mrb[0].mxu0
        %v900 = vadd.f32 %v796, %v899
        %v901 = vpop.f32.mrb[0].mxu0
        %902 = vmatprep.mubr.bf16.mxu0 0
        %903 = vmatmul.mubr.bf16.gmra.mrb[0].mxu0 %v762
        %v904 = vpop.f32.mrb[0].mxu0
        %v905 = vadd.f32 %v796, %v904
        %v906 = vpop.f32.mrb[0].mxu0
        %v907 = vpop.f32.mrb[0].mxu0
        %v908 = vadd.f32 %v796, %v907
        %v909 = vpop.f32.mrb[0].mxu0
        %910 = vmatprep.mubr.bf16.mxu0 0
        %911 = vmatmul.mubr.bf16.gmra.mrb[0].mxu0 %v763
        %v912 = vpop.f32.mrb[0].mxu0
        %v913 = vadd.f32 %v796, %v912
        %v914 = vpop.f32.mrb[0].mxu0
        %v915 = vpop.f32.mrb[0].mxu0
        %v916 = vadd.f32 %v796, %v915
        %v917 = vpop.f32.mrb[0].mxu0
        %918 = vmatprep.mubr.bf16.mxu0 0
        %919 = vmatmul.mubr.bf16.gmra.mrb[0].mxu0 %v764
        %v920 = vpop.f32.mrb[0].mxu0
        %v921 = vadd.f32 %v796, %v920
        %v922 = vpop.f32.mrb[0].mxu0
        %v923 = vpop.f32.mrb[0].mxu0
        %v924 = vadd.f32 %v796, %v923
        %v925 = vpop.f32.mrb[0].mxu0
        %926 = vmatprep.mubr.bf16.mxu0 0
        %927 = vmatmul.mubr.bf16.gmra.mrb[0].mxu0 %v765
        %v928 = vpop.f32.mrb[0].mxu0
        %v929 = vadd.f32 %v796, %v928
        %v930 = vpop.f32.mrb[0].mxu0
        %v931 = vpop.f32.mrb[0].mxu0
        %v932 = vadd.f32 %v796, %v931
        %v933 = vpop.f32.mrb[0].mxu0
        %934 = vmatprep.mubr.bf16.mxu0 0
        %935 = vmatmul.mubr.bf16.gmra.mrb[0].mxu0 %v766
        %v936 = vpop.f32.mrb[0].mxu0
        %v937 = vadd.f32 %v796, %v936
        %v938 = vpop.f32.mrb[0].mxu0
        %v939 = vpop.f32.mrb[0].mxu0
        %v940 = vadd.f32 %v796, %v939
        %v941 = vpop.f32.mrb[0].mxu0
        %942 = vmatprep.mubr.bf16.mxu0 0
        %943 = vmatmul.mubr.bf16.gmra.mrb[0].mxu0 %v767
        %v944 = vpop.f32.mrb[0].mxu0
        %v945 = vadd.f32 %v796, %v944
        %v946 = vpop.f32.mrb[0].mxu0
        %v947 = vpop.f32.mrb[0].mxu0
        %v948 = vadd.f32 %v796, %v947
        %v949 = vpop.f32.mrb[0].mxu0
        %950 = vmatprep.mubr.bf16.mxu0 0
        %951 = vmatmul.mubr.bf16.gmra.mrb[0].mxu0 %v768
        %v952 = vpop.f32.mrb[0].mxu0
        %v953 = vadd.f32 %v796, %v952
        %v954 = vpop.f32.mrb[0].mxu0
        %v955 = vpop.f32.mrb[0].mxu0
        %v956 = vadd.f32 %v796, %v955
        %v957 = vpop.f32.mrb[0].mxu0
        %958 = vmatprep.mubr.bf16.mxu0 0
        %959 = vmatmul.mubr.bf16.gmra.mrb[0].mxu0 %v769
        %v960 = vpop.f32.mrb[0].mxu0
        %v961 = vadd.f32 %v796, %v960
        %v962 = vpop.f32.mrb[0].mxu0
        %v963 = vpop.f32.mrb[0].mxu0
        %v964 = vadd.f32 %v796, %v963
        %v965 = vpop.f32.mrb[0].mxu0
        %966 = vmatprep.mubr.bf16.mxu0 0
        %967 = vmatmul.mubr.bf16.gmra.mrb[0].mxu0 %v770
        %v968 = vpop.f32.mrb[0].mxu0
        %v969 = vadd.f32 %v796, %v968
        %v970 = vpop.f32.mrb[0].mxu0
        %v971 = vpop.f32.mrb[0].mxu0
        %v972 = vadd.f32 %v796, %v971
        %v973 = vpop.f32.mrb[0].mxu0
        %974 = vmatprep.mubr.bf16.mxu0 0
        %975 = vmatmul.mubr.bf16.gmra.mrb[0].mxu0 %v771
        %v976 = vpop.f32.mrb[0].mxu0
        %v977 = vadd.f32 %v796, %v976
        %v978 = vpop.f32.mrb[0].mxu0
        %v979 = vpop.f32.mrb[0].mxu0
        %v980 = vadd.f32 %v796, %v979
        %v981 = vpop.f32.mrb[0].mxu0
        %982 = vmatprep.mubr.bf16.mxu0 0
        %983 = vmatmul.mubr.bf16.gmra.mrb[0].mxu0 %v772
        %v984 = vpop.f32.mrb[0].mxu0
        %v985 = vadd.f32 %v796, %v984
        %v986 = vpop.f32.mrb[0].mxu0
        %v987 = vpop.f32.mrb[0].mxu0
        %v988 = vadd.f32 %v796, %v987
        %v989 = vpop.f32.mrb[0].mxu0
        %990 = vmatprep.mubr.bf16.mxu0 0
        %991 = vmatmul.mubr.bf16.gmra.mrb[0].mxu0 %v773
        %v992 = vpop.f32.mrb[0].mxu0
        %v993 = vadd.f32 %v796, %v992
        %v994 = vpop.f32.mrb[0].mxu0
        %v995 = vpop.f32.mrb[0].mxu0
        %v996 = vadd.f32 %v796, %v995
        %v997 = vpop.f32.mrb[0].mxu0
        %998 = vmatprep.mubr.bf16.mxu0 0
        %999 = vmatmul.mubr.bf16.gmra.mrb[0].mxu0 %v774
        %v1000 = vpop.f32.mrb[0].mxu0
        %v1001 = vadd.f32 %v796, %v1000
        %v1002 = vpop.f32.mrb[0].mxu0
        %v1003 = vpop.f32.mrb[0].mxu0
        %v1004 = vadd.f32 %v796, %v1003
        %v1005 = vpop.f32.mrb[0].mxu0
        %1006 = vdwg.mxu0
        %v1007 = vld [vmem:[%s390] sm:$0xff]
        %v1008 = vld [vmem:[%s390 + $0x8] sm:$0xff]
        %v1009 = vld [vmem:[%s390 + $0x10] sm:$0xff]
        %v1010 = vld [vmem:[%s390 + $0x18] sm:$0xff]
        %v1011 = vld [vmem:[%s390 + $0x20] sm:$0xff]
        %v1012 = vld [vmem:[%s390 + $0x28] sm:$0xff]
        %v1013 = vld [vmem:[%s390 + $0x30] sm:$0xff]
        %v1014 = vld [vmem:[%s390 + $0x38] sm:$0xff]
        %v1015 = vld [vmem:[%s390 + $0x40] sm:$0xff]
        %v1016 = vld [vmem:[%s390 + $0x48] sm:$0xff]
        %v1017 = vld [vmem:[%s390 + $0x50] sm:$0xff]
        %v1018 = vld [vmem:[%s390 + $0x58] sm:$0xff]
        %v1019 = vld [vmem:[%s390 + $0x60] sm:$0xff]
        %v1020 = vld [vmem:[%s390 + $0x68] sm:$0xff]
        %v1021 = vld [vmem:[%s390 + $0x70] sm:$0xff]
        %v1022 = vld [vmem:[%s390 + $0x78] sm:$0xff]
        %v1023 = vld [vmem:[%s390 + $0x80] sm:$0xff]
        %v1024 = vld [vmem:[%s390 + $0x88] sm:$0xff]
        %v1025 = vld [vmem:[%s390 + $0x90] sm:$0xff]
        %v1026 = vld [vmem:[%s390 + $0x98] sm:$0xff]
        %v1027 = vld [vmem:[%s390 + $0xa0] sm:$0xff]
        %v1028 = vld [vmem:[%s390 + $0xa8] sm:$0xff]
        %v1029 = vld [vmem:[%s390 + $0xb0] sm:$0xff]
        %v1030 = vld [vmem:[%s390 + $0xb8] sm:$0xff]
        %v1031 = vld [vmem:[%s390 + $0xc0] sm:$0xff]
        %v1032 = vld [vmem:[%s390 + $0xc8] sm:$0xff]
        %v1033 = vld [vmem:[%s390 + $0xd0] sm:$0xff]
        %v1034 = vld [vmem:[%s390 + $0xd8] sm:$0xff]
        %v1035 = vld [vmem:[%s390 + $0xe0] sm:$0xff]
        %v1036 = vld [vmem:[%s390 + $0xe8] sm:$0xff]
        %v1037 = vld [vmem:[%s390 + $0xf0] sm:$0xff]
        %v1038 = vld [vmem:[%s390 + $0xf8] sm:$0xff]
        %vm1039 = vcmp.gt.f32.partialorder %v1007, 0.5
        %vm1040 = vcmp.gt.f32.partialorder %v1008, 0.5
        %vm1041 = vcmp.gt.f32.partialorder %v1009, 0.5
        %vm1042 = vcmp.gt.f32.partialorder %v1010, 0.5
        %vm1043 = vcmp.gt.f32.partialorder %v1011, 0.5
        %vm1044 = vcmp.gt.f32.partialorder %v1012, 0.5
        %vm1045 = vcmp.gt.f32.partialorder %v1013, 0.5
        %vm1046 = vcmp.gt.f32.partialorder %v1014, 0.5
        %vm1047 = vcmp.gt.f32.partialorder %v1015, 0.5
        %vm1048 = vcmp.gt.f32.partialorder %v1016, 0.5
        %vm1049 = vcmp.gt.f32.partialorder %v1017, 0.5
        %vm1050 = vcmp.gt.f32.partialorder %v1018, 0.5
        %vm1051 = vcmp.gt.f32.partialorder %v1019, 0.5
        %vm1052 = vcmp.gt.f32.partialorder %v1020, 0.5
        %vm1053 = vcmp.gt.f32.partialorder %v1021, 0.5
        %vm1054 = vcmp.gt.f32.partialorder %v1022, 0.5
        %vm1055 = vcmp.gt.f32.partialorder %v1023, 0.5
        %vm1056 = vcmp.gt.f32.partialorder %v1024, 0.5
        %vm1057 = vcmp.gt.f32.partialorder %v1025, 0.5
        %vm1058 = vcmp.gt.f32.partialorder %v1026, 0.5
        %vm1059 = vcmp.gt.f32.partialorder %v1027, 0.5
        %vm1060 = vcmp.gt.f32.partialorder %v1028, 0.5
        %vm1061 = vcmp.gt.f32.partialorder %v1029, 0.5
        %vm1062 = vcmp.gt.f32.partialorder %v1030, 0.5
        %vm1063 = vcmp.gt.f32.partialorder %v1031, 0.5
        %vm1064 = vcmp.gt.f32.partialorder %v1032, 0.5
        %vm1065 = vcmp.gt.f32.partialorder %v1033, 0.5
        %vm1066 = vcmp.gt.f32.partialorder %v1034, 0.5
        %vm1067 = vcmp.gt.f32.partialorder %v1035, 0.5
        %vm1068 = vcmp.gt.f32.partialorder %v1036, 0.5
        %vm1069 = vcmp.gt.f32.partialorder %v1037, 0.5
        %vm1070 = vcmp.gt.f32.partialorder %v1038, 0.5
        %v1071 = vld [vmem:[%s7] sm:$0x1]
        %v1072 = vsel %vm1039, 1, 0
        %v1073 = vsel %vm1040, 1, 0
        %v1074 = vsel %vm1041, 1, 0
        %v1075 = vsel %vm1042, 1, 0
        %v1076 = vsel %vm1043, 1, 0
        %v1077 = vsel %vm1044, 1, 0
        %v1078 = vsel %vm1045, 1, 0
        %v1079 = vsel %vm1046, 1, 0
        %v1080 = vsel %vm1047, 1, 0
        %v1081 = vsel %vm1048, 1, 0
        %v1082 = vsel %vm1049, 1, 0
        %v1083 = vsel %vm1050, 1, 0
        %v1084 = vsel %vm1051, 1, 0
        %v1085 = vsel %vm1052, 1, 0
        %v1086 = vsel %vm1053, 1, 0
        %v1087 = vsel %vm1054, 1, 0
        %v1088 = vsel %vm1055, 1, 0
        %v1089 = vsel %vm1056, 1, 0
        %v1090 = vsel %vm1057, 1, 0
        %v1091 = vsel %vm1058, 1, 0
        %v1092 = vsel %vm1059, 1, 0
        %v1093 = vsel %vm1060, 1, 0
        %v1094 = vsel %vm1061, 1, 0
        %v1095 = vsel %vm1062, 1, 0
        %v1096 = vsel %vm1063, 1, 0
        %v1097 = vsel %vm1064, 1, 0
        %v1098 = vsel %vm1065, 1, 0
        %v1099 = vsel %vm1066, 1, 0
        %v1100 = vsel %vm1067, 1, 0
        %v1101 = vsel %vm1068, 1, 0
        %v1102 = vsel %vm1069, 1, 0
        %v1103 = vsel %vm1070, 1, 0
        %1104 = vset.pattern.permute.xlu0 0
        %1105 = vperm.xlu0 %1104, %v1072
        %v1106 = vpop.permute.xlu0 %1105
        %1107 = vset.pattern.permute.xlu0 0
        %1108 = vperm.xlu0 %1107, %v1073
        %v1109 = vpop.permute.xlu0 %1108
        %1110 = vset.pattern.permute.xlu0 0
        %1111 = vperm.xlu0 %1110, %v1074
        %v1112 = vpop.permute.xlu0 %1111
        %1113 = vset.pattern.permute.xlu0 0
        %1114 = vperm.xlu0 %1113, %v1075
        %v1115 = vpop.permute.xlu0 %1114
        %1116 = vset.pattern.permute.xlu0 0
        %1117 = vperm.xlu0 %1116, %v1076
        %v1118 = vpop.permute.xlu0 %1117
        %1119 = vset.pattern.permute.xlu0 0
        %1120 = vperm.xlu0 %1119, %v1077
        %v1121 = vpop.permute.xlu0 %1120
        %1122 = vset.pattern.permute.xlu0 0
        %1123 = vperm.xlu0 %1122, %v1078
        %v1124 = vpop.permute.xlu0 %1123
        %1125 = vset.pattern.permute.xlu0 0
        %1126 = vperm.xlu0 %1125, %v1079
        %v1127 = vpop.permute.xlu0 %1126
        %1128 = vset.pattern.permute.xlu0 0
        %1129 = vperm.xlu0 %1128, %v1080
        %v1130 = vpop.permute.xlu0 %1129
        %1131 = vset.pattern.permute.xlu0 0
        %1132 = vperm.xlu0 %1131, %v1081
        %v1133 = vpop.permute.xlu0 %1132
        %1134 = vset.pattern.permute.xlu0 0
        %1135 = vperm.xlu0 %1134, %v1082
        %v1136 = vpop.permute.xlu0 %1135
        %1137 = vset.pattern.permute.xlu0 0
        %1138 = vperm.xlu0 %1137, %v1083
        %v1139 = vpop.permute.xlu0 %1138
        %1140 = vset.pattern.permute.xlu0 0
        %1141 = vperm.xlu0 %1140, %v1084
        %v1142 = vpop.permute.xlu0 %1141
        %1143 = vset.pattern.permute.xlu0 0
        %1144 = vperm.xlu0 %1143, %v1085
        %v1145 = vpop.permute.xlu0 %1144
        %1146 = vset.pattern.permute.xlu0 0
        %1147 = vperm.xlu0 %1146, %v1086
        %v1148 = vpop.permute.xlu0 %1147
        %1149 = vset.pattern.permute.xlu0 0
        %1150 = vperm.xlu0 %1149, %v1087
        %v1151 = vpop.permute.xlu0 %1150
        %1152 = vset.pattern.permute.xlu0 0
        %1153 = vperm.xlu0 %1152, %v1088
        %v1154 = vpop.permute.xlu0 %1153
        %1155 = vset.pattern.permute.xlu0 0
        %1156 = vperm.xlu0 %1155, %v1089
        %v1157 = vpop.permute.xlu0 %1156
        %1158 = vset.pattern.permute.xlu0 0
        %1159 = vperm.xlu0 %1158, %v1090
        %v1160 = vpop.permute.xlu0 %1159
        %1161 = vset.pattern.permute.xlu0 0
        %1162 = vperm.xlu0 %1161, %v1091
        %v1163 = vpop.permute.xlu0 %1162
        %1164 = vset.pattern.permute.xlu0 0
        %1165 = vperm.xlu0 %1164, %v1092
        %v1166 = vpop.permute.xlu0 %1165
        %1167 = vset.pattern.permute.xlu0 0
        %1168 = vperm.xlu0 %1167, %v1093
        %v1169 = vpop.permute.xlu0 %1168
        %1170 = vset.pattern.permute.xlu0 0
        %1171 = vperm.xlu0 %1170, %v1094
        %v1172 = vpop.permute.xlu0 %1171
        %1173 = vset.pattern.permute.xlu0 0
        %1174 = vperm.xlu0 %1173, %v1095
        %v1175 = vpop.permute.xlu0 %1174
        %1176 = vset.pattern.permute.xlu0 0
        %1177 = vperm.xlu0 %1176, %v1096
        %v1178 = vpop.permute.xlu0 %1177
        %1179 = vset.pattern.permute.xlu0 0
        %1180 = vperm.xlu0 %1179, %v1097
        %v1181 = vpop.permute.xlu0 %1180
        %1182 = vset.pattern.permute.xlu0 0
        %1183 = vperm.xlu0 %1182, %v1098
        %v1184 = vpop.permute.xlu0 %1183
        %1185 = vset.pattern.permute.xlu0 0
        %1186 = vperm.xlu0 %1185, %v1099
        %v1187 = vpop.permute.xlu0 %1186
        %1188 = vset.pattern.permute.xlu0 0
        %1189 = vperm.xlu0 %1188, %v1100
        %v1190 = vpop.permute.xlu0 %1189
        %1191 = vset.pattern.permute.xlu0 0
        %1192 = vperm.xlu0 %1191, %v1101
        %v1193 = vpop.permute.xlu0 %1192
        %1194 = vset.pattern.permute.xlu0 0
        %1195 = vperm.xlu0 %1194, %v1102
        %v1196 = vpop.permute.xlu0 %1195
        %1197 = vset.pattern.permute.xlu0 0
        %1198 = vperm.xlu0 %1197, %v1103
        %v1199 = vpop.permute.xlu0 %1198
        %vm1200 = vcmp.eq.s32.totalorder %v1106, 1
        %vm1201 = vcmp.eq.s32.totalorder %v1109, 1
        %vm1202 = vcmp.eq.s32.totalorder %v1112, 1
        %vm1203 = vcmp.eq.s32.totalorder %v1115, 1
        %vm1204 = vcmp.eq.s32.totalorder %v1118, 1
        %vm1205 = vcmp.eq.s32.totalorder %v1121, 1
        %vm1206 = vcmp.eq.s32.totalorder %v1124, 1
        %vm1207 = vcmp.eq.s32.totalorder %v1127, 1
        %vm1208 = vcmp.eq.s32.totalorder %v1130, 1
        %vm1209 = vcmp.eq.s32.totalorder %v1133, 1
        %vm1210 = vcmp.eq.s32.totalorder %v1136, 1
        %vm1211 = vcmp.eq.s32.totalorder %v1139, 1
        %vm1212 = vcmp.eq.s32.totalorder %v1142, 1
        %vm1213 = vcmp.eq.s32.totalorder %v1145, 1
        %vm1214 = vcmp.eq.s32.totalorder %v1148, 1
        %vm1215 = vcmp.eq.s32.totalorder %v1151, 1
        %vm1216 = vcmp.eq.s32.totalorder %v1154, 1
        %vm1217 = vcmp.eq.s32.totalorder %v1157, 1
        %vm1218 = vcmp.eq.s32.totalorder %v1160, 1
        %vm1219 = vcmp.eq.s32.totalorder %v1163, 1
        %vm1220 = vcmp.eq.s32.totalorder %v1166, 1
        %vm1221 = vcmp.eq.s32.totalorder %v1169, 1
        %vm1222 = vcmp.eq.s32.totalorder %v1172, 1
        %vm1223 = vcmp.eq.s32.totalorder %v1175, 1
        %vm1224 = vcmp.eq.s32.totalorder %v1178, 1
        %vm1225 = vcmp.eq.s32.totalorder %v1181, 1
        %vm1226 = vcmp.eq.s32.totalorder %v1184, 1
        %vm1227 = vcmp.eq.s32.totalorder %v1187, 1
        %vm1228 = vcmp.eq.s32.totalorder %v1190, 1
        %vm1229 = vcmp.eq.s32.totalorder %v1193, 1
        %vm1230 = vcmp.eq.s32.totalorder %v1196, 1
        %vm1231 = vcmp.eq.s32.totalorder %v1199, 1
        %v1233 = vlaneseq
        %v1234 = vshrl.u32 %v1233, 7
        %v1235 = vsub.s32 0, %v1234
        %v1236 = vrot.slane %v1071, %v1235
        %v1238 = vsel %vm1200, %v1236, %v881
        %v1239 = vsel %vm1201, %v1236, %v884
        %v1240 = vsel %vm1202, %v1236, %v889
        %v1241 = vsel %vm1203, %v1236, %v892
        %v1242 = vsel %vm1204, %v1236, %v897
        %v1243 = vsel %vm1205, %v1236, %v900
        %v1244 = vsel %vm1206, %v1236, %v905
        %v1245 = vsel %vm1207, %v1236, %v908
        %v1246 = vsel %vm1208, %v1236, %v913
        %v1247 = vsel %vm1209, %v1236, %v916
        %v1248 = vsel %vm1210, %v1236, %v921
        %v1249 = vsel %vm1211, %v1236, %v924
        %v1250 = vsel %vm1212, %v1236, %v929
        %v1251 = vsel %vm1213, %v1236, %v932
        %v1252 = vsel %vm1214, %v1236, %v937
        %v1253 = vsel %vm1215, %v1236, %v940
        %v1254 = vsel %vm1216, %v1236, %v945
        %v1255 = vsel %vm1217, %v1236, %v948
        %v1256 = vsel %vm1218, %v1236, %v953
        %v1257 = vsel %vm1219, %v1236, %v956
        %v1258 = vsel %vm1220, %v1236, %v961
        %v1259 = vsel %vm1221, %v1236, %v964
        %v1260 = vsel %vm1222, %v1236, %v969
        %v1261 = vsel %vm1223, %v1236, %v972
        %v1262 = vsel %vm1224, %v1236, %v977
        %v1263 = vsel %vm1225, %v1236, %v980
        %v1264 = vsel %vm1226, %v1236, %v985
        %v1265 = vsel %vm1227, %v1236, %v988
        %v1266 = vsel %vm1228, %v1236, %v993
        %v1267 = vsel %vm1229, %v1236, %v996
        %v1268 = vsel %vm1230, %v1236, %v1001
        %v1269 = vsel %vm1231, %v1236, %v1004
        %v1270 = vld [vmem:[%s396] sm:$0xff]
        %v1271 = vld [vmem:[%s396 + $0x8] sm:$0xff]
        %v1272 = vld [vmem:[%s396 + $0x10] sm:$0xff]
        %v1273 = vld [vmem:[%s396 + $0x18] sm:$0xff]
        %v1274 = vld [vmem:[%s396 + $0x20] sm:$0xff]
        %v1275 = vld [vmem:[%s396 + $0x28] sm:$0xff]
        %v1276 = vld [vmem:[%s396 + $0x30] sm:$0xff]
        %v1277 = vld [vmem:[%s396 + $0x38] sm:$0xff]
        %v1278 = vld [vmem:[%s396 + $0x40] sm:$0xff]
        %v1279 = vld [vmem:[%s396 + $0x48] sm:$0xff]
        %v1280 = vld [vmem:[%s396 + $0x50] sm:$0xff]
        %v1281 = vld [vmem:[%s396 + $0x58] sm:$0xff]
        %v1282 = vld [vmem:[%s396 + $0x60] sm:$0xff]
        %v1283 = vld [vmem:[%s396 + $0x68] sm:$0xff]
        %v1284 = vld [vmem:[%s396 + $0x70] sm:$0xff]
        %v1285 = vld [vmem:[%s396 + $0x78] sm:$0xff]
        %v1286 = vld [vmem:[%s396 + $0x80] sm:$0xff]
        %v1287 = vld [vmem:[%s396 + $0x88] sm:$0xff]
        %v1288 = vld [vmem:[%s396 + $0x90] sm:$0xff]
        %v1289 = vld [vmem:[%s396 + $0x98] sm:$0xff]
        %v1290 = vld [vmem:[%s396 + $0xa0] sm:$0xff]
        %v1291 = vld [vmem:[%s396 + $0xa8] sm:$0xff]
        %v1292 = vld [vmem:[%s396 + $0xb0] sm:$0xff]
        %v1293 = vld [vmem:[%s396 + $0xb8] sm:$0xff]
        %v1294 = vld [vmem:[%s396 + $0xc0] sm:$0xff]
        %v1295 = vld [vmem:[%s396 + $0xc8] sm:$0xff]
        %v1296 = vld [vmem:[%s396 + $0xd0] sm:$0xff]
        %v1297 = vld [vmem:[%s396 + $0xd8] sm:$0xff]
        %v1298 = vld [vmem:[%s396 + $0xe0] sm:$0xff]
        %v1299 = vld [vmem:[%s396 + $0xe8] sm:$0xff]
        %v1300 = vld [vmem:[%s396 + $0xf0] sm:$0xff]
        %v1301 = vld [vmem:[%s396 + $0xf8] sm:$0xff]
        %v1302 = vsub.f32 %v1238, %v1270
        %v1303 = vsub.f32 %v1239, %v1271
        %v1304 = vsub.f32 %v1240, %v1272
        %v1305 = vsub.f32 %v1241, %v1273
        %v1306 = vsub.f32 %v1242, %v1274
        %v1307 = vsub.f32 %v1243, %v1275
        %v1308 = vsub.f32 %v1244, %v1276
        %v1309 = vsub.f32 %v1245, %v1277
        %v1310 = vsub.f32 %v1246, %v1278
        %v1311 = vsub.f32 %v1247, %v1279
        %v1312 = vsub.f32 %v1248, %v1280
        %v1313 = vsub.f32 %v1249, %v1281
        %v1314 = vsub.f32 %v1250, %v1282
        %v1315 = vsub.f32 %v1251, %v1283
        %v1316 = vsub.f32 %v1252, %v1284
        %v1317 = vsub.f32 %v1253, %v1285
        %v1318 = vsub.f32 %v1254, %v1286
        %v1319 = vsub.f32 %v1255, %v1287
        %v1320 = vsub.f32 %v1256, %v1288
        %v1321 = vsub.f32 %v1257, %v1289
        %v1322 = vsub.f32 %v1258, %v1290
        %v1323 = vsub.f32 %v1259, %v1291
        %v1324 = vsub.f32 %v1260, %v1292
        %v1325 = vsub.f32 %v1261, %v1293
        %v1326 = vsub.f32 %v1262, %v1294
        %v1327 = vsub.f32 %v1263, %v1295
        %v1328 = vsub.f32 %v1264, %v1296
        %v1329 = vsub.f32 %v1265, %v1297
        %v1330 = vsub.f32 %v1266, %v1298
        %v1331 = vsub.f32 %v1267, %v1299
        %v1332 = vsub.f32 %v1268, %v1300
        %v1333 = vsub.f32 %v1269, %v1301
        %v1334 = vmul.f32 %v1302, %v1302
        %v1335 = vmul.f32 %v1303, %v1303
        %v1336 = vmul.f32 %v1304, %v1304
        %v1337 = vmul.f32 %v1305, %v1305
        %v1338 = vmul.f32 %v1306, %v1306
        %v1339 = vmul.f32 %v1307, %v1307
        %v1340 = vmul.f32 %v1308, %v1308
        %v1341 = vmul.f32 %v1309, %v1309
        %v1342 = vmul.f32 %v1310, %v1310
        %v1343 = vmul.f32 %v1311, %v1311
        %v1344 = vmul.f32 %v1312, %v1312
        %v1345 = vmul.f32 %v1313, %v1313
        %v1346 = vmul.f32 %v1314, %v1314
        %v1347 = vmul.f32 %v1315, %v1315
        %v1348 = vmul.f32 %v1316, %v1316
        %v1349 = vmul.f32 %v1317, %v1317
        %v1350 = vmul.f32 %v1318, %v1318
        %v1351 = vmul.f32 %v1319, %v1319
        %v1352 = vmul.f32 %v1320, %v1320
        %v1353 = vmul.f32 %v1321, %v1321
        %v1354 = vmul.f32 %v1322, %v1322
        %v1355 = vmul.f32 %v1323, %v1323
        %v1356 = vmul.f32 %v1324, %v1324
        %v1357 = vmul.f32 %v1325, %v1325
        %v1358 = vmul.f32 %v1326, %v1326
        %v1359 = vmul.f32 %v1327, %v1327
        %v1360 = vmul.f32 %v1328, %v1328
        %v1361 = vmul.f32 %v1329, %v1329
        %v1362 = vmul.f32 %v1330, %v1330
        %v1363 = vmul.f32 %v1331, %v1331
        %v1364 = vmul.f32 %v1332, %v1332
        %v1365 = vmul.f32 %v1333, %v1333
        %v1366 = vadd.f32 %v1334, %v1335
        %v1367 = vadd.f32 %v1366, %v1336
        %v1368 = vadd.f32 %v1367, %v1337
        %v1369 = vadd.f32 %v1368, %v1338
        %v1370 = vadd.f32 %v1369, %v1339
        %v1371 = vadd.f32 %v1370, %v1340
        %v1372 = vadd.f32 %v1371, %v1341
        %v1373 = vadd.f32 %v1372, %v1342
        %v1374 = vadd.f32 %v1373, %v1343
        %v1375 = vadd.f32 %v1374, %v1344
        %v1376 = vadd.f32 %v1375, %v1345
        %v1377 = vadd.f32 %v1376, %v1346
        %v1378 = vadd.f32 %v1377, %v1347
        %v1379 = vadd.f32 %v1378, %v1348
        %v1380 = vadd.f32 %v1379, %v1349
        %v1381 = vadd.f32 %v1380, %v1350
        %v1382 = vadd.f32 %v1381, %v1351
        %v1383 = vadd.f32 %v1382, %v1352
        %v1384 = vadd.f32 %v1383, %v1353
        %v1385 = vadd.f32 %v1384, %v1354
        %v1386 = vadd.f32 %v1385, %v1355
        %v1387 = vadd.f32 %v1386, %v1356
        %v1388 = vadd.f32 %v1387, %v1357
        %v1389 = vadd.f32 %v1388, %v1358
        %v1390 = vadd.f32 %v1389, %v1359
        %v1391 = vadd.f32 %v1390, %v1360
        %v1392 = vadd.f32 %v1391, %v1361
        %v1393 = vadd.f32 %v1392, %v1362
        %v1394 = vadd.f32 %v1393, %v1363
        %v1395 = vadd.f32 %v1394, %v1364
        %v1396 = vadd.f32 %v1395, %v1365
        %1397 = vst [vmem:[%s384] sm:$0xff] %v1396
        %s1398 = sand.u32 %s217, 1
        %s1399 = scalar_lea.sflag [#allocation4], %s1398
        %s1400 = sand.u32 %s217, 1
        %s1401 = smul.addr %s1400, 8
        %s1402 = scalar_lea.vmem [#allocation8], %s1401
        // Predicated region
        $region65: #{tpu_custom_call.1} parent=51 // pred_check
          %p1403 = pneg %p227
        $region66: #{tpu_custom_call.1} parent=51 // pred_check_branch
          %1405 = sbr.rel (%p1403) target = $region68
        $region67: #{tpu_custom_call.1} parent=51 // pred_region
          %s1407 = ssub.s32 128, 128
          %1408 = vsyncadd %s1399, %s1407
          %s1409 = smul.addr %s26, 128
          %s1410 = scalar_lea.hbm %s8, %s1409
          %s1412 = sshll.u32 %s1402, 4
          %s1413 = int_to_ptr.vmem [resolvable:$true] %s1412
          %1415 = dma.vmem_to_hbm [thread:$0]  %s1413, 128, %s1410, %s1399
        $region68: #{tpu_custom_call.1} parent=51 // pred_fallthru
          _
      $region52: #{tpu_custom_call.1} parent=5 // pred_fallthru
        _
      %p1416 = scmp.le.s32.totalorder 2, %s21
      // Predicated region
      $region69: #{tpu_custom_call.1} parent=5 // pred_check
        %p1417 = pneg %p1416
      $region70: #{tpu_custom_call.1} parent=5 // pred_check_branch
        %1419 = sbr.rel (%p1417) target = $region72
      $region71: #{tpu_custom_call.1} parent=5 // pred_region
        %s1420 = ssub.s32 %s21, 2
        // Predicated region
        $region73: #{tpu_custom_call.1} parent=71 // pred_check
          %p1421 = pneg %p233
        $region74: #{tpu_custom_call.1} parent=71 // pred_check_branch
          %1423 = sbr.rel (%p1421) target = $region76
        $region75: #{tpu_custom_call.1} parent=71 // pred_region
          %s1424 = sand.u32 %s218, 1
          %s1425 = scalar_lea.sflag [#allocation4], %s1424
          %s1426 = sand.u32 %s218, 1
          %s1427 = smul.addr %s1426, 8
          %s1428 = scalar_lea.vmem [#allocation8], %s1427
          %1429 = dma.done %s1425, 128
        $region76: #{tpu_custom_call.1} parent=71 // pred_fallthru
          _
      $region72: #{tpu_custom_call.1} parent=5 // pred_fallthru
        _
    $region6: #{tpu_custom_call.1} parent=1 // loop_footer
      %s25 = sadd.s32 1, %s21
    $region7: #{tpu_custom_call.1} parent=1 // loop_footer_branch
      %20 = sbr.rel target = $region3
    $region8: #{tpu_custom_call.1} parent=1 // loop_exit
      _
    %1430 = vsyncpa [#allocation3], 1
    %s1431 = scalar_lea.sflag [#allocation3], 1
    %1432 = vsyncpa %s1431, 1
    %1433 = vsyncpa [#allocation6], 1
    %1434 = vsyncpa [#allocation4], 1
    %s1435 = scalar_lea.sflag [#allocation4], 1
    %1436 = vsyncpa %s1435, 1

</llo_original>
